<compile_context>
chip_gen: v7x
topology: tpu7x:2x2x1
jax: 0.10.0
libtpu: 0.0.40
codegen_flags: <defaults>
</compile_context>

<pallas_src>
import jax
import jax.numpy as jnp
from jax import lax
from jax.experimental import pallas as pl
from jax.experimental.pallas import tpu as pltpu

# ---------------- config ----------------
BATCH = 2
CHANNELS = 3
IMG = 16
PATCH = 8
NPATCH = (IMG // PATCH) ** 2          # 4 patches
SEQ = NPATCH + 1                      # 5 tokens (CLS + patches)
SEQ_PAD = 8                           # per-batch rows padded to a full sublane tile
RP = BATCH * SEQ_PAD                  # 16 padded token rows
HIDDEN = 32
NUM_HEADS = 2
HEAD_DIM = HIDDEN // NUM_HEADS        # 16
INTERMEDIATE = 64
NUM_LAYERS = 2
FACE_CLASSES = 10
EMOTION_CLASSES = 7
NUM_CLASSES = FACE_CLASSES + EMOTION_CLASSES
LN_EPS = 1e-12                        # HF ViT layer_norm_eps default
PATCH_FLAT = CHANNELS * PATCH * PATCH # 192
WBLK = 128                            # lane-aligned block width inside the weight blobs
OUT_PAD = 128                         # lane-dense logits output width
SEQ_PAD_SHIFT = SEQ_PAD.bit_length() - 1
assert (1 << SEQ_PAD_SHIFT) == SEQ_PAD

# wk32 blob (bf16, K=HIDDEN weights) column-block indices
HEADS_BLK = 3 * NUM_LAYERS            # blocks: [wqkv x L][wo x L][wi x L][heads]

# fvec blob (f32 bias / LN / pos rows, each padded to 128 lanes) row layout
ROW_PATCH_B = 0
ROW_CLS = 1
ROW_POS = 2                           # rows 2 .. 2+NPATCH-1
ROW_LAYER0 = ROW_POS + NPATCH         # 6
ROWS_PER_LAYER = 8                    # ln1_g, ln1_b, bqkv, bo, ln2_g, ln2_b, bi, bo2
ROW_FINAL_G = ROW_LAYER0 + NUM_LAYERS * ROWS_PER_LAYER
ROW_FINAL_B = ROW_FINAL_G + 1
ROW_HEADS_B = ROW_FINAL_B + 1
FVEC_ROWS = 32                        # padded row count of the f32 blob


# ---------------- in-kernel helpers ----------------
def _layer_norm(x, gamma, beta):
    # x: (rows, HIDDEN); gamma/beta: (1, HIDDEN). Biased variance like nn.LayerNorm.
    mean = jnp.mean(x, axis=-1, keepdims=True)
    xc = x - mean
    var = jnp.mean(xc * xc, axis=-1, keepdims=True)
    return xc * lax.rsqrt(var + LN_EPS) * gamma + beta


# ---------------- the single fused kernel ----------------
def _fused_vit_kernel(patches_ref, wrows_ref, wk32_ref, fvec_ref, logits_ref):
    bf16 = jnp.bfloat16
    fv = fvec_ref[...]                                          # (32, 128) f32, loaded once

    # ---- patch projection: stride=PATCH conv as one (B*NPATCH, C*P*P)@(C*P*P, H) matmul ----
    patch_w = wrows_ref[0:PATCH_FLAT, :]                        # (192, 32) bf16
    patch_emb = (jnp.dot(patches_ref[...].astype(bf16), patch_w,
                         preferred_element_type=jnp.float32)
                 + fv[ROW_PATCH_B:ROW_PATCH_B + 1, :HIDDEN])    # (B*NPATCH, 32) f32

    # ---- token assembly in registers: [CLS | patches+pos | zero pad] per batch ----
    cls_row = fv[ROW_CLS:ROW_CLS + 1, :HIDDEN]                  # CLS pos-embedding pre-folded
    pos_patch = fv[ROW_POS:ROW_POS + NPATCH, :HIDDEN]
    zpad = jnp.zeros((SEQ_PAD - SEQ, HIDDEN), jnp.float32)
    pieces = []
    for b in range(BATCH):
        pieces += [cls_row,
                   patch_emb[b * NPATCH:(b + 1) * NPATCH, :] + pos_patch,
                   zpad]
    tok = jnp.concatenate(pieces, axis=0)                       # (RP, HIDDEN) f32 residual

    # ---- block-diagonal attention mask (pad key columns masked), computed once ----
    rid = lax.broadcasted_iota(jnp.int32, (RP, RP), 0)
    cid = lax.broadcasted_iota(jnp.int32, (RP, RP), 1)
    valid = ((rid >> SEQ_PAD_SHIFT) == (cid >> SEQ_PAD_SHIFT)) & \
            ((cid & (SEQ_PAD - 1)) < SEQ)
    mask_add = jnp.where(valid, 0.0, -1e30).astype(jnp.float32)

    # ---- transformer encoder layers (static unroll; weights resident in VMEM) ----
    for l in range(NUM_LAYERS):
        base = ROW_LAYER0 + l * ROWS_PER_LAYER
        ln1 = _layer_norm(tok, fv[base:base + 1, :HIDDEN], fv[base + 1:base + 2, :HIDDEN])

        # fused QKV projection (attention scale pre-folded into Q weights/bias)
        wqkv = wk32_ref[:, l * WBLK:(l + 1) * WBLK]             # (32, 128) bf16
        qkv = (jnp.dot(ln1.astype(bf16), wqkv, preferred_element_type=jnp.float32)
               + fv[base + 2:base + 3, :])                      # (RP, 128); cols 0:96 real

        # one block-diagonal attention per head (all batches at once); wo split per head
        wo_l = wk32_ref[:, (NUM_LAYERS + l) * WBLK:(NUM_LAYERS + l + 1) * WBLK]  # (32,128)
        attn = None
        for h in range(NUM_HEADS):
            c0 = h * HEAD_DIM
            qh = qkv[:, c0:c0 + HEAD_DIM].astype(bf16)
            kh = qkv[:, HIDDEN + c0:HIDDEN + c0 + HEAD_DIM].astype(bf16)
            vh = qkv[:, 2 * HIDDEN + c0:2 * HIDDEN + c0 + HEAD_DIM].astype(bf16)
            s = lax.dot_general(qh, kh, (((1,), (1,)), ((), ())),
                                preferred_element_type=jnp.float32) + mask_add  # (RP, RP)
            s = s - jnp.max(s, axis=-1, keepdims=True)
            p = jnp.exp(s)                                      # f32 on EUP
            p = p * pl.reciprocal(jnp.sum(p, axis=-1, keepdims=True), approx=True)
            ctx = jnp.dot(p.astype(bf16), vh, preferred_element_type=jnp.float32)  # (RP, HD)
            contrib = jnp.dot(ctx.astype(bf16), wo_l[c0:c0 + HEAD_DIM, :],
                              preferred_element_type=jnp.float32)                  # (RP, 128)
            attn = contrib if attn is None else attn + contrib
        attn = attn + fv[base + 3:base + 4, :]                  # bo (128-lane padded)
        tok = tok + attn[:, :HIDDEN]

        ln2 = _layer_norm(tok, fv[base + 4:base + 5, :HIDDEN], fv[base + 5:base + 6, :HIDDEN])
        wi = wk32_ref[:, (2 * NUM_LAYERS + l) * WBLK:(2 * NUM_LAYERS + l + 1) * WBLK]
        mid = (jnp.dot(ln2.astype(bf16), wi, preferred_element_type=jnp.float32)
               + fv[base + 6:base + 7, :])                      # (RP, 128); cols 64: are zero
        # TODO(synk): HF ViT default is exact erf-GELU; tanh approximation kept (f32 path).
        mid = jax.nn.gelu(mid, approximate=True)
        wo2 = wrows_ref[PATCH_FLAT + l * WBLK:PATCH_FLAT + (l + 1) * WBLK, :]  # (128, 32)
        tok = tok + (jnp.dot(mid.astype(bf16), wo2, preferred_element_type=jnp.float32)
                     + fv[base + 7:base + 8, :HIDDEN])

    # ---- final LayerNorm + merged dual heads on the CLS rows only; single store ----
    cls_tok = jnp.concatenate([tok[b * SEQ_PAD:b * SEQ_PAD + 1, :] for b in range(BATCH)],
                              axis=0)                           # (BATCH, HIDDEN)
    feats = _layer_norm(cls_tok, fv[ROW_FINAL_G:ROW_FINAL_G + 1, :HIDDEN],
                        fv[ROW_FINAL_B:ROW_FINAL_B + 1, :HIDDEN])
    heads_w = wk32_ref[:, HEADS_BLK * WBLK:(HEADS_BLK + 1) * WBLK]  # (32, 128) bf16
    logits_ref[...] = (jnp.dot(feats.astype(bf16), heads_w,
                               preferred_element_type=jnp.float32)
                       + fv[ROW_HEADS_B:ROW_HEADS_B + 1, :])    # (BATCH, 128) lane-dense


# ---------------- full forward (glue + single kernel) ----------------
def dual_head_vit_forward(x, kp):
    B = x.shape[0]
    assert B == BATCH
    # NCHW space-to-depth patchify (layout glue; im2col of the stride=PATCH conv)
    p = x.reshape(B, CHANNELS, IMG // PATCH, PATCH, IMG // PATCH, PATCH)
    p = p.transpose(0, 2, 4, 1, 3, 5).reshape(B * NPATCH, PATCH_FLAT)

    vmem = lambda: pl.BlockSpec(memory_space=pltpu.MemorySpace.VMEM)
    logits = pl.pallas_call(
        _fused_vit_kernel,
        out_shape=jax.ShapeDtypeStruct((B, OUT_PAD), jnp.float32),
        in_specs=[vmem(), vmem(), vmem(), vmem()],
        out_specs=vmem(),
    )(p, kp["wrows"], kp["wk32"], kp["fvec"])
    return logits[:, :FACE_CLASSES], logits[:, FACE_CLASSES:NUM_CLASSES]


# ---------------- deterministic parameter init (natural / PyTorch-like shapes) ----------------
def init_params(key):
    ks = iter(jax.random.split(key, 64))

    def nrm(shape, scale=0.02):
        return (scale * jax.random.normal(next(ks), shape)).astype(jnp.float32)

    conv_w = nrm((HIDDEN, CHANNELS, PATCH, PATCH))   # PyTorch Conv2d weight layout
    params = {
        "patch_w": conv_w.reshape(HIDDEN, PATCH_FLAT).T,        # (C*P*P, H)
        "patch_b": nrm((HIDDEN,)),
        "cls": nrm((1, 1, HIDDEN)),
        "pos": nrm((1, SEQ, HIDDEN)),
        "final_g": 1.0 + nrm((HIDDEN,)),
        "final_b": nrm((HIDDEN,)),
        "face_w": nrm((HIDDEN, FACE_CLASSES)),                  # nn.Linear weight, pre-transposed
        "face_b": nrm((FACE_CLASSES,)),
        "emo_w": nrm((HIDDEN, EMOTION_CLASSES)),
        "emo_b": nrm((EMOTION_CLASSES,)),
        "layers": [],
    }
    for _ in range(NUM_LAYERS):
        params["layers"].append({
            "ln1_g": 1.0 + nrm((HIDDEN,)), "ln1_b": nrm((HIDDEN,)),
            "wq": nrm((HIDDEN, HIDDEN)), "bq": nrm((HIDDEN,)),
            "wk": nrm((HIDDEN, HIDDEN)), "bk": nrm((HIDDEN,)),
            "wv": nrm((HIDDEN, HIDDEN)), "bv": nrm((HIDDEN,)),
            "wo": nrm((HIDDEN, HIDDEN)), "bo": nrm((HIDDEN,)),
            "ln2_g": 1.0 + nrm((HIDDEN,)), "ln2_b": nrm((HIDDEN,)),
            "wi": nrm((HIDDEN, INTERMEDIATE)), "bi": nrm((INTERMEDIATE,)),
            "wo2": nrm((INTERMEDIATE, HIDDEN)), "bo2": nrm((HIDDEN,)),
        })
    return params


# ---------------- parameter prep: pack everything into 3 VMEM blobs ----------------
def prepare_params(params):
    bf16 = jnp.bfloat16
    scale = 1.0 / (HEAD_DIM ** 0.5)
    layers = params["layers"]

    def pad_cols(w, width=WBLK):
        return jnp.pad(w, ((0, 0), (0, width - w.shape[1])))

    def pad_rows(w, rows=WBLK):
        return jnp.pad(w, ((0, rows - w.shape[0]), (0, 0)))

    # blob 1: all K=HIDDEN weights, one 128-lane block each (scale folded into Q)
    blocks = [pad_cols(jnp.concatenate([lp["wq"] * scale, lp["wk"], lp["wv"]], axis=1))
              for lp in layers]
    blocks += [pad_cols(lp["wo"]) for lp in layers]
    blocks += [pad_cols(lp["wi"]) for lp in layers]
    blocks += [pad_cols(jnp.concatenate([params["face_w"], params["emo_w"]], axis=1))]
    wk32 = jnp.concatenate(blocks, axis=1).astype(bf16)          # (32, (3L+1)*128)

    # blob 2: weights contracting over a non-HIDDEN axis, row-stacked
    wrows = jnp.concatenate([params["patch_w"]] +
                            [pad_rows(lp["wo2"]) for lp in layers], axis=0).astype(bf16)

    # blob 3: every f32 vector (biases / LN / pos / cls), one 128-lane row each
    def row(v):
        v = v.reshape(1, -1)
        return jnp.pad(v, ((0, 0), (0, WBLK - v.shape[1])))

    rows = [row(params["patch_b"]),
            row(params["cls"][0, 0] + params["pos"][0, 0])]      # CLS pos pre-folded
    rows += [row(params["pos"][0, 1 + i]) for i in range(NPATCH)]
    for lp in layers:
        rows += [row(lp["ln1_g"]), row(lp["ln1_b"]),
                 row(jnp.concatenate([lp["bq"] * scale, lp["bk"], lp["bv"]])),
                 row(lp["bo"]),
                 row(lp["ln2_g"]), row(lp["ln2_b"]),
                 row(lp["bi"]), row(lp["bo2"])]
    rows += [row(params["final_g"]), row(params["final_b"]),
             row(jnp.concatenate([params["face_b"], params["emo_b"]]))]
    fvec = jnp.concatenate(rows, axis=0).astype(jnp.float32)
    fvec = jnp.pad(fvec, ((0, FVEC_ROWS - fvec.shape[0]), (0, 0)))   # (32, 128)

    return {"wk32": wk32, "wrows": wrows, "fvec": fvec}


# ---------------- pure-JAX f32 reference (same math, un-fused parameters) ----------------
def reference_forward(x, params):
    B = x.shape[0]
    p = x.reshape(B, CHANNELS, IMG // PATCH, PATCH, IMG // PATCH, PATCH)
    p = p.transpose(0, 2, 4, 1, 3, 5).reshape(B, NPATCH, -1)
    patch_emb = p @ params["patch_w"] + params["patch_b"]
    cls = jnp.broadcast_to(params["cls"], (B, 1, HIDDEN))
    tok = jnp.concatenate([cls, patch_emb], axis=1) + params["pos"]

    def ln(z, g, b):
        m = z.mean(-1, keepdims=True)
        v = ((z - m) ** 2).mean(-1, keepdims=True)
        return (z - m) * lax.rsqrt(v + LN_EPS) * g + b

    def split_heads(t):
        return t.reshape(B, SEQ, NUM_HEADS, HEAD_DIM).transpose(0, 2, 1, 3)

    for lp in params["layers"]:
        h = tok
        l1 = ln(h, lp["ln1_g"], lp["ln1_b"])
        q = split_heads(l1 @ lp["wq"] + lp["bq"])
        k = split_heads(l1 @ lp["wk"] + lp["bk"])
        v = split_heads(l1 @ lp["wv"] + lp["bv"])
        s = jnp.einsum("bhqd,bhkd->bhqk", q, k) / (HEAD_DIM ** 0.5)
        pr = jax.nn.softmax(s, axis=-1)
        ctx = jnp.einsum("bhqk,bhkd->bhqd", pr, v)
        ctx = ctx.transpose(0, 2, 1, 3).reshape(B, SEQ, HIDDEN)
        h = h + ctx @ lp["wo"] + lp["bo"]
        l2 = ln(h, lp["ln2_g"], lp["ln2_b"])
        mid = jax.nn.gelu(l2 @ lp["wi"] + lp["bi"], approximate=True)
        tok = h + mid @ lp["wo2"] + lp["bo2"]

    feats = ln(tok[:, 0, :], params["final_g"], params["final_b"])
    face = feats @ params["face_w"] + params["face_b"]
    emo = feats @ params["emo_w"] + params["emo_b"]
    return face, emo


# ---------------- main ----------------
if __name__ == "__main__":
    key = jax.random.PRNGKey(0)
    pkey, xkey = jax.random.split(key)
    params = init_params(pkey)
    kparams = prepare_params(params)
    x = jax.random.normal(xkey, (BATCH, CHANNELS, IMG, IMG), dtype=jnp.float32)

    face_out, emotion_out = jax.jit(dual_head_vit_forward)(x, kparams)
    jax.block_until_ready((face_out, emotion_out))

    assert face_out.shape == (BATCH, FACE_CLASSES)
    assert emotion_out.shape == (BATCH, EMOTION_CLASSES)

    ref_face, ref_emo = reference_forward(x, params)
    # bf16 matmul inputs (f32 accumulation) in-kernel vs pure-f32 reference -> relaxed atol.
    assert jnp.allclose(face_out, ref_face, atol=1e-2, rtol=5e-2), "face head mismatch"
    assert jnp.allclose(emotion_out, ref_emo, atol=1e-2, rtol=5e-2), "emotion head mismatch"

    print("KERNEL_OK")
</pallas_src>

<mosaic_0001>
module attributes {stable_mosaic.version = 11 : i64} {
  func.func @_fused_vit_kernel(%arg0: memref<8x192xf32, #tpu.memory_space<vmem>>, %arg1: memref<448x32xbf16, #tpu.memory_space<vmem>>, %arg2: memref<32x896xbf16, #tpu.memory_space<vmem>>, %arg3: memref<32x128xf32, #tpu.memory_space<vmem>>, %arg4: memref<2x128xf32, #tpu.memory_space<vmem>>) attributes {dimension_semantics = [], scalar_prefetch = 0 : i64, scratch_operands = 0 : i64, tpu.core_type = #tpu.core_type<tc>} {
    %c0 = arith.constant 0 : index
    %c0_0 = arith.constant 0 : index
    %0 = vector.load %arg3[%c0, %c0_0] : memref<32x128xf32, #tpu.memory_space<vmem>>, vector<32x128xf32>
    %c0_1 = arith.constant 0 : index
    %c0_2 = arith.constant 0 : index
    %1 = vector.load %arg1[%c0_1, %c0_2] : memref<448x32xbf16, #tpu.memory_space<vmem>>, vector<192x32xbf16>
    %c0_3 = arith.constant 0 : index
    %c0_4 = arith.constant 0 : index
    %2 = vector.load %arg0[%c0_3, %c0_4] : memref<8x192xf32, #tpu.memory_space<vmem>>, vector<8x192xf32>
    %3 = arith.truncf %2 : vector<8x192xf32> to vector<8x192xbf16>
    %cst = arith.constant dense<0.000000e+00> : vector<8x32xf32>
    %4 = tpu.matmul %3, %1, %cst {dimension_numbers = #tpu.dot_dimension_numbers<[1], [0], [0], [1], [0, 0, 1, 1], [], []>} : vector<8x192xbf16>, vector<192x32xbf16>, vector<8x32xf32> -> vector<8x32xf32>
    %5 = vector.extract_strided_slice %0 {offsets = [0, 0], sizes = [1, 32], strides = [1, 1]} : vector<32x128xf32> to vector<1x32xf32>
    %6 = vector.broadcast %5 : vector<1x32xf32> to vector<8x32xf32>
    %7 = arith.addf %4, %6 : vector<8x32xf32>
    %8 = vector.extract_strided_slice %0 {offsets = [1, 0], sizes = [1, 32], strides = [1, 1]} : vector<32x128xf32> to vector<1x32xf32>
    %9 = vector.extract_strided_slice %0 {offsets = [2, 0], sizes = [4, 32], strides = [1, 1]} : vector<32x128xf32> to vector<4x32xf32>
    %cst_5 = arith.constant 0.000000e+00 : f32
    %10 = vector.broadcast %cst_5 : f32 to vector<3x32xf32>
    %11 = vector.extract_strided_slice %7 {offsets = [0, 0], sizes = [4, 32], strides = [1, 1]} : vector<8x32xf32> to vector<4x32xf32>
    %12 = arith.addf %11, %9 : vector<4x32xf32>
    %13 = vector.extract_strided_slice %7 {offsets = [4, 0], sizes = [4, 32], strides = [1, 1]} : vector<8x32xf32> to vector<4x32xf32>
    %14 = arith.addf %13, %9 : vector<4x32xf32>
    %15 = tpu.concatenate %8, %12, %10, %8, %14, %10 in 0 : vector<1x32xf32>, vector<4x32xf32>, vector<3x32xf32>, vector<1x32xf32>, vector<4x32xf32>, vector<3x32xf32> -> vector<16x32xf32>
    %16 = tpu.iota {dimensions = array<i32: 0>} : vector<16x16xi32>
    %17 = tpu.iota {dimensions = array<i32: 1>} : vector<16x16xi32>
    %c3_i32 = arith.constant 3 : i32
    %18 = vector.broadcast %c3_i32 : i32 to vector<16x16xi32>
    %19 = arith.shrsi %16, %18 : vector<16x16xi32>
    %c3_i32_6 = arith.constant 3 : i32
    %20 = vector.broadcast %c3_i32_6 : i32 to vector<16x16xi32>
    %21 = arith.shrsi %17, %20 : vector<16x16xi32>
    %22 = arith.cmpi eq, %19, %21 : vector<16x16xi32>
    %c7_i32 = arith.constant 7 : i32
    %23 = vector.broadcast %c7_i32 : i32 to vector<16x16xi32>
    %24 = arith.andi %17, %23 : vector<16x16xi32>
    %c5_i32 = arith.constant 5 : i32
    %25 = vector.broadcast %c5_i32 : i32 to vector<16x16xi32>
    %26 = arith.cmpi slt, %24, %25 : vector<16x16xi32>
    %27 = arith.andi %22, %26 : vector<16x16xi1>
    %cst_7 = arith.constant 0.000000e+00 : f32
    %cst_8 = arith.constant -1.000000e+30 : f32
    %28 = vector.broadcast %cst_7 : f32 to vector<16x16xf32>
    %29 = vector.broadcast %cst_8 : f32 to vector<16x16xf32>
    %30 = arith.select %27, %28, %29 : vector<16x16xi1>, vector<16x16xf32>
    %31 = vector.extract_strided_slice %0 {offsets = [6, 0], sizes = [1, 32], strides = [1, 1]} : vector<32x128xf32> to vector<1x32xf32>
    %32 = vector.extract_strided_slice %0 {offsets = [7, 0], sizes = [1, 32], strides = [1, 1]} : vector<32x128xf32> to vector<1x32xf32>
    %cst_9 = arith.constant dense<0.000000e+00> : vector<16xf32>
    %33 = vector.multi_reduction <add>, %15, %cst_9 [1] : vector<16x32xf32> to vector<16xf32>
    %34 = vector.shape_cast %33 : vector<16xf32> to vector<16x1xf32>
    %cst_10 = arith.constant 3.200000e+01 : f32
    %35 = vector.broadcast %cst_10 : f32 to vector<16x1xf32>
    %36 = arith.divf %34, %35 : vector<16x1xf32>
    %37 = vector.broadcast %36 : vector<16x1xf32> to vector<16x32xf32>
    %38 = arith.subf %15, %37 : vector<16x32xf32>
    %39 = arith.mulf %38, %38 : vector<16x32xf32>
    %cst_11 = arith.constant dense<0.000000e+00> : vector<16xf32>
    %40 = vector.multi_reduction <add>, %39, %cst_11 [1] : vector<16x32xf32> to vector<16xf32>
    %41 = vector.shape_cast %40 : vector<16xf32> to vector<16x1xf32>
    %cst_12 = arith.constant 3.200000e+01 : f32
    %42 = vector.broadcast %cst_12 : f32 to vector<16x1xf32>
    %43 = arith.divf %41, %42 : vector<16x1xf32>
    %cst_13 = arith.constant 9.99999996E-13 : f32
    %44 = vector.broadcast %cst_13 : f32 to vector<16x1xf32>
    %45 = arith.addf %43, %44 : vector<16x1xf32>
    %46 = math.rsqrt %45 : vector<16x1xf32>
    %47 = vector.broadcast %46 : vector<16x1xf32> to vector<16x32xf32>
    %48 = arith.mulf %38, %47 : vector<16x32xf32>
    %49 = vector.broadcast %31 : vector<1x32xf32> to vector<16x32xf32>
    %50 = arith.mulf %48, %49 : vector<16x32xf32>
    %51 = vector.broadcast %32 : vector<1x32xf32> to vector<16x32xf32>
    %52 = arith.addf %50, %51 : vector<16x32xf32>
    %c0_14 = arith.constant 0 : index
    %c0_15 = arith.constant 0 : index
    %53 = vector.load %arg2[%c0_14, %c0_15] : memref<32x896xbf16, #tpu.memory_space<vmem>>, vector<32x128xbf16>
    %54 = arith.truncf %52 : vector<16x32xf32> to vector<16x32xbf16>
    %cst_16 = arith.constant dense<0.000000e+00> : vector<16x128xf32>
    %55 = tpu.matmul %54, %53, %cst_16 {dimension_numbers = #tpu.dot_dimension_numbers<[1], [0], [0], [1], [0, 0, 1, 1], [], []>} : vector<16x32xbf16>, vector<32x128xbf16>, vector<16x128xf32> -> vector<16x128xf32>
    %56 = vector.extract_strided_slice %0 {offsets = [8, 0], sizes = [1, 128], strides = [1, 1]} : vector<32x128xf32> to vector<1x128xf32>
    %57 = vector.broadcast %56 : vector<1x128xf32> to vector<16x128xf32>
    %58 = arith.addf %55, %57 : vector<16x128xf32>
    %c0_17 = arith.constant 0 : index
    %c256 = arith.constant 256 : index
    %59 = vector.load %arg2[%c0_17, %c256] : memref<32x896xbf16, #tpu.memory_space<vmem>>, vector<32x128xbf16>
    %60 = vector.extract_strided_slice %58 {offsets = [0, 0], sizes = [16, 16], strides = [1, 1]} : vector<16x128xf32> to vector<16x16xf32>
    %61 = arith.truncf %60 : vector<16x16xf32> to vector<16x16xbf16>
    %62 = vector.extract_strided_slice %58 {offsets = [0, 32], sizes = [16, 16], strides = [1, 1]} : vector<16x128xf32> to vector<16x16xf32>
    %63 = arith.truncf %62 : vector<16x16xf32> to vector<16x16xbf16>
    %64 = vector.extract_strided_slice %58 {offsets = [0, 64], sizes = [16, 16], strides = [1, 1]} : vector<16x128xf32> to vector<16x16xf32>
    %65 = arith.truncf %64 : vector<16x16xf32> to vector<16x16xbf16>
    %cst_18 = arith.constant dense<0.000000e+00> : vector<16x16xf32>
    %66 = tpu.matmul %61, %63, %cst_18 {dimension_numbers = #tpu.dot_dimension_numbers<[1], [1], [0], [0], [0, 0, 1, 0], [], []>} : vector<16x16xbf16>, vector<16x16xbf16>, vector<16x16xf32> -> vector<16x16xf32>
    %67 = arith.addf %66, %30 : vector<16x16xf32>
    %cst_19 = arith.constant dense<0xFF800000> : vector<16xf32>
    %68 = vector.multi_reduction <maximumf>, %67, %cst_19 [1] : vector<16x16xf32> to vector<16xf32>
    %69 = vector.shape_cast %68 : vector<16xf32> to vector<16x1xf32>
    %70 = vector.broadcast %69 : vector<16x1xf32> to vector<16x16xf32>
    %71 = arith.subf %67, %70 : vector<16x16xf32>
    %72 = math.exp %71 : vector<16x16xf32>
    %cst_20 = arith.constant dense<0.000000e+00> : vector<16xf32>
    %73 = vector.multi_reduction <add>, %72, %cst_20 [1] : vector<16x16xf32> to vector<16xf32>
    %74 = vector.shape_cast %73 : vector<16xf32> to vector<16x1xf32>
    %75 = tpu.reciprocal %74 {approx = true} : vector<16x1xf32> -> vector<16x1xf32>
    %76 = vector.broadcast %75 : vector<16x1xf32> to vector<16x16xf32>
    %77 = arith.mulf %72, %76 : vector<16x16xf32>
    %78 = arith.truncf %77 : vector<16x16xf32> to vector<16x16xbf16>
    %cst_21 = arith.constant dense<0.000000e+00> : vector<16x16xf32>
    %79 = tpu.matmul %78, %65, %cst_21 {dimension_numbers = #tpu.dot_dimension_numbers<[1], [0], [0], [1], [0, 0, 1, 1], [], []>} : vector<16x16xbf16>, vector<16x16xbf16>, vector<16x16xf32> -> vector<16x16xf32>
    %80 = arith.truncf %79 : vector<16x16xf32> to vector<16x16xbf16>
    %81 = vector.extract_strided_slice %59 {offsets = [0, 0], sizes = [16, 128], strides = [1, 1]} : vector<32x128xbf16> to vector<16x128xbf16>
    %cst_22 = arith.constant dense<0.000000e+00> : vector<16x128xf32>
    %82 = tpu.matmul %80, %81, %cst_22 {dimension_numbers = #tpu.dot_dimension_numbers<[1], [0], [0], [1], [0, 0, 1, 1], [], []>} : vector<16x16xbf16>, vector<16x128xbf16>, vector<16x128xf32> -> vector<16x128xf32>
    %83 = vector.extract_strided_slice %58 {offsets = [0, 16], sizes = [16, 16], strides = [1, 1]} : vector<16x128xf32> to vector<16x16xf32>
    %84 = arith.truncf %83 : vector<16x16xf32> to vector<16x16xbf16>
    %85 = vector.extract_strided_slice %58 {offsets = [0, 48], sizes = [16, 16], strides = [1, 1]} : vector<16x128xf32> to vector<16x16xf32>
    %86 = arith.truncf %85 : vector<16x16xf32> to vector<16x16xbf16>
    %87 = vector.extract_strided_slice %58 {offsets = [0, 80], sizes = [16, 16], strides = [1, 1]} : vector<16x128xf32> to vector<16x16xf32>
    %88 = arith.truncf %87 : vector<16x16xf32> to vector<16x16xbf16>
    %cst_23 = arith.constant dense<0.000000e+00> : vector<16x16xf32>
    %89 = tpu.matmul %84, %86, %cst_23 {dimension_numbers = #tpu.dot_dimension_numbers<[1], [1], [0], [0], [0, 0, 1, 0], [], []>} : vector<16x16xbf16>, vector<16x16xbf16>, vector<16x16xf32> -> vector<16x16xf32>
    %90 = arith.addf %89, %30 : vector<16x16xf32>
    %cst_24 = arith.constant dense<0xFF800000> : vector<16xf32>
    %91 = vector.multi_reduction <maximumf>, %90, %cst_24 [1] : vector<16x16xf32> to vector<16xf32>
    %92 = vector.shape_cast %91 : vector<16xf32> to vector<16x1xf32>
    %93 = vector.broadcast %92 : vector<16x1xf32> to vector<16x16xf32>
    %94 = arith.subf %90, %93 : vector<16x16xf32>
    %95 = math.exp %94 : vector<16x16xf32>
    %cst_25 = arith.constant dense<0.000000e+00> : vector<16xf32>
    %96 = vector.multi_reduction <add>, %95, %cst_25 [1] : vector<16x16xf32> to vector<16xf32>
    %97 = vector.shape_cast %96 : vector<16xf32> to vector<16x1xf32>
    %98 = tpu.reciprocal %97 {approx = true} : vector<16x1xf32> -> vector<16x1xf32>
    %99 = vector.broadcast %98 : vector<16x1xf32> to vector<16x16xf32>
    %100 = arith.mulf %95, %99 : vector<16x16xf32>
    %101 = arith.truncf %100 : vector<16x16xf32> to vector<16x16xbf16>
    %cst_26 = arith.constant dense<0.000000e+00> : vector<16x16xf32>
    %102 = tpu.matmul %101, %88, %cst_26 {dimension_numbers = #tpu.dot_dimension_numbers<[1], [0], [0], [1], [0, 0, 1, 1], [], []>} : vector<16x16xbf16>, vector<16x16xbf16>, vector<16x16xf32> -> vector<16x16xf32>
    %103 = arith.truncf %102 : vector<16x16xf32> to vector<16x16xbf16>
    %104 = vector.extract_strided_slice %59 {offsets = [16, 0], sizes = [16, 128], strides = [1, 1]} : vector<32x128xbf16> to vector<16x128xbf16>
    %cst_27 = arith.constant dense<0.000000e+00> : vector<16x128xf32>
    %105 = tpu.matmul %103, %104, %cst_27 {dimension_numbers = #tpu.dot_dimension_numbers<[1], [0], [0], [1], [0, 0, 1, 1], [], []>} : vector<16x16xbf16>, vector<16x128xbf16>, vector<16x128xf32> -> vector<16x128xf32>
    %106 = arith.addf %82, %105 : vector<16x128xf32>
    %107 = vector.extract_strided_slice %0 {offsets = [9, 0], sizes = [1, 128], strides = [1, 1]} : vector<32x128xf32> to vector<1x128xf32>
    %108 = vector.broadcast %107 : vector<1x128xf32> to vector<16x128xf32>
    %109 = arith.addf %106, %108 : vector<16x128xf32>
    %110 = vector.extract_strided_slice %109 {offsets = [0, 0], sizes = [16, 32], strides = [1, 1]} : vector<16x128xf32> to vector<16x32xf32>
    %111 = arith.addf %15, %110 : vector<16x32xf32>
    %112 = vector.extract_strided_slice %0 {offsets = [10, 0], sizes = [1, 32], strides = [1, 1]} : vector<32x128xf32> to vector<1x32xf32>
    %113 = vector.extract_strided_slice %0 {offsets = [11, 0], sizes = [1, 32], strides = [1, 1]} : vector<32x128xf32> to vector<1x32xf32>
    %cst_28 = arith.constant dense<0.000000e+00> : vector<16xf32>
    %114 = vector.multi_reduction <add>, %111, %cst_28 [1] : vector<16x32xf32> to vector<16xf32>
    %115 = vector.shape_cast %114 : vector<16xf32> to vector<16x1xf32>
    %cst_29 = arith.constant 3.200000e+01 : f32
    %116 = vector.broadcast %cst_29 : f32 to vector<16x1xf32>
    %117 = arith.divf %115, %116 : vector<16x1xf32>
    %118 = vector.broadcast %117 : vector<16x1xf32> to vector<16x32xf32>
    %119 = arith.subf %111, %118 : vector<16x32xf32>
    %120 = arith.mulf %119, %119 : vector<16x32xf32>
    %cst_30 = arith.constant dense<0.000000e+00> : vector<16xf32>
    %121 = vector.multi_reduction <add>, %120, %cst_30 [1] : vector<16x32xf32> to vector<16xf32>
    %122 = vector.shape_cast %121 : vector<16xf32> to vector<16x1xf32>
    %cst_31 = arith.constant 3.200000e+01 : f32
    %123 = vector.broadcast %cst_31 : f32 to vector<16x1xf32>
    %124 = arith.divf %122, %123 : vector<16x1xf32>
    %cst_32 = arith.constant 9.99999996E-13 : f32
    %125 = vector.broadcast %cst_32 : f32 to vector<16x1xf32>
    %126 = arith.addf %124, %125 : vector<16x1xf32>
    %127 = math.rsqrt %126 : vector<16x1xf32>
    %128 = vector.broadcast %127 : vector<16x1xf32> to vector<16x32xf32>
    %129 = arith.mulf %119, %128 : vector<16x32xf32>
    %130 = vector.broadcast %112 : vector<1x32xf32> to vector<16x32xf32>
    %131 = arith.mulf %129, %130 : vector<16x32xf32>
    %132 = vector.broadcast %113 : vector<1x32xf32> to vector<16x32xf32>
    %133 = arith.addf %131, %132 : vector<16x32xf32>
    %c0_33 = arith.constant 0 : index
    %c512 = arith.constant 512 : index
    %134 = vector.load %arg2[%c0_33, %c512] : memref<32x896xbf16, #tpu.memory_space<vmem>>, vector<32x128xbf16>
    %135 = arith.truncf %133 : vector<16x32xf32> to vector<16x32xbf16>
    %cst_34 = arith.constant dense<0.000000e+00> : vector<16x128xf32>
    %136 = tpu.matmul %135, %134, %cst_34 {dimension_numbers = #tpu.dot_dimension_numbers<[1], [0], [0], [1], [0, 0, 1, 1], [], []>} : vector<16x32xbf16>, vector<32x128xbf16>, vector<16x128xf32> -> vector<16x128xf32>
    %137 = vector.extract_strided_slice %0 {offsets = [12, 0], sizes = [1, 128], strides = [1, 1]} : vector<32x128xf32> to vector<1x128xf32>
    %138 = vector.broadcast %137 : vector<1x128xf32> to vector<16x128xf32>
    %139 = arith.addf %136, %138 : vector<16x128xf32>
    %140 = arith.mulf %139, %139 : vector<16x128xf32>
    %141 = arith.mulf %139, %140 : vector<16x128xf32>
    %cst_35 = arith.constant 4.471500e-02 : f32
    %142 = vector.broadcast %cst_35 : f32 to vector<16x128xf32>
    %143 = arith.mulf %142, %141 : vector<16x128xf32>
    %144 = arith.addf %139, %143 : vector<16x128xf32>
    %cst_36 = arith.constant 0.797884583 : f32
    %145 = vector.broadcast %cst_36 : f32 to vector<16x128xf32>
    %146 = arith.mulf %145, %144 : vector<16x128xf32>
    %147 = math.tanh %146 : vector<16x128xf32>
    %cst_37 = arith.constant 1.000000e+00 : f32
    %148 = vector.broadcast %cst_37 : f32 to vector<16x128xf32>
    %149 = arith.addf %148, %147 : vector<16x128xf32>
    %cst_38 = arith.constant 5.000000e-01 : f32
    %150 = vector.broadcast %cst_38 : f32 to vector<16x128xf32>
    %151 = arith.mulf %150, %149 : vector<16x128xf32>
    %152 = arith.mulf %139, %151 : vector<16x128xf32>
    %c192 = arith.constant 192 : index
    %c0_39 = arith.constant 0 : index
    %153 = vector.load %arg1[%c192, %c0_39] : memref<448x32xbf16, #tpu.memory_space<vmem>>, vector<128x32xbf16>
    %154 = arith.truncf %152 : vector<16x128xf32> to vector<16x128xbf16>
    %cst_40 = arith.constant dense<0.000000e+00> : vector<16x32xf32>
    %155 = tpu.matmul %154, %153, %cst_40 {dimension_numbers = #tpu.dot_dimension_numbers<[1], [0], [0], [1], [0, 0, 1, 1], [], []>} : vector<16x128xbf16>, vector<128x32xbf16>, vector<16x32xf32> -> vector<16x32xf32>
    %156 = vector.extract_strided_slice %0 {offsets = [13, 0], sizes = [1, 32], strides = [1, 1]} : vector<32x128xf32> to vector<1x32xf32>
    %157 = vector.broadcast %156 : vector<1x32xf32> to vector<16x32xf32>
    %158 = arith.addf %155, %157 : vector<16x32xf32>
    %159 = arith.addf %111, %158 : vector<16x32xf32>
    %160 = vector.extract_strided_slice %0 {offsets = [14, 0], sizes = [1, 32], strides = [1, 1]} : vector<32x128xf32> to vector<1x32xf32>
    %161 = vector.extract_strided_slice %0 {offsets = [15, 0], sizes = [1, 32], strides = [1, 1]} : vector<32x128xf32> to vector<1x32xf32>
    %cst_41 = arith.constant dense<0.000000e+00> : vector<16xf32>
    %162 = vector.multi_reduction <add>, %159, %cst_41 [1] : vector<16x32xf32> to vector<16xf32>
    %163 = vector.shape_cast %162 : vector<16xf32> to vector<16x1xf32>
    %cst_42 = arith.constant 3.200000e+01 : f32
    %164 = vector.broadcast %cst_42 : f32 to vector<16x1xf32>
    %165 = arith.divf %163, %164 : vector<16x1xf32>
    %166 = vector.broadcast %165 : vector<16x1xf32> to vector<16x32xf32>
    %167 = arith.subf %159, %166 : vector<16x32xf32>
    %168 = arith.mulf %167, %167 : vector<16x32xf32>
    %cst_43 = arith.constant dense<0.000000e+00> : vector<16xf32>
    %169 = vector.multi_reduction <add>, %168, %cst_43 [1] : vector<16x32xf32> to vector<16xf32>
    %170 = vector.shape_cast %169 : vector<16xf32> to vector<16x1xf32>
    %cst_44 = arith.constant 3.200000e+01 : f32
    %171 = vector.broadcast %cst_44 : f32 to vector<16x1xf32>
    %172 = arith.divf %170, %171 : vector<16x1xf32>
    %cst_45 = arith.constant 9.99999996E-13 : f32
    %173 = vector.broadcast %cst_45 : f32 to vector<16x1xf32>
    %174 = arith.addf %172, %173 : vector<16x1xf32>
    %175 = math.rsqrt %174 : vector<16x1xf32>
    %176 = vector.broadcast %175 : vector<16x1xf32> to vector<16x32xf32>
    %177 = arith.mulf %167, %176 : vector<16x32xf32>
    %178 = vector.broadcast %160 : vector<1x32xf32> to vector<16x32xf32>
    %179 = arith.mulf %177, %178 : vector<16x32xf32>
    %180 = vector.broadcast %161 : vector<1x32xf32> to vector<16x32xf32>
    %181 = arith.addf %179, %180 : vector<16x32xf32>
    %c0_46 = arith.constant 0 : index
    %c128 = arith.constant 128 : index
    %182 = vector.load %arg2[%c0_46, %c128] : memref<32x896xbf16, #tpu.memory_space<vmem>>, vector<32x128xbf16>
    %183 = arith.truncf %181 : vector<16x32xf32> to vector<16x32xbf16>
    %cst_47 = arith.constant dense<0.000000e+00> : vector<16x128xf32>
    %184 = tpu.matmul %183, %182, %cst_47 {dimension_numbers = #tpu.dot_dimension_numbers<[1], [0], [0], [1], [0, 0, 1, 1], [], []>} : vector<16x32xbf16>, vector<32x128xbf16>, vector<16x128xf32> -> vector<16x128xf32>
    %185 = vector.extract_strided_slice %0 {offsets = [16, 0], sizes = [1, 128], strides = [1, 1]} : vector<32x128xf32> to vector<1x128xf32>
    %186 = vector.broadcast %185 : vector<1x128xf32> to vector<16x128xf32>
    %187 = arith.addf %184, %186 : vector<16x128xf32>
    %c0_48 = arith.constant 0 : index
    %c384 = arith.constant 384 : index
    %188 = vector.load %arg2[%c0_48, %c384] : memref<32x896xbf16, #tpu.memory_space<vmem>>, vector<32x128xbf16>
    %189 = vector.extract_strided_slice %187 {offsets = [0, 0], sizes = [16, 16], strides = [1, 1]} : vector<16x128xf32> to vector<16x16xf32>
    %190 = arith.truncf %189 : vector<16x16xf32> to vector<16x16xbf16>
    %191 = vector.extract_strided_slice %187 {offsets = [0, 32], sizes = [16, 16], strides = [1, 1]} : vector<16x128xf32> to vector<16x16xf32>
    %192 = arith.truncf %191 : vector<16x16xf32> to vector<16x16xbf16>
    %193 = vector.extract_strided_slice %187 {offsets = [0, 64], sizes = [16, 16], strides = [1, 1]} : vector<16x128xf32> to vector<16x16xf32>
    %194 = arith.truncf %193 : vector<16x16xf32> to vector<16x16xbf16>
    %cst_49 = arith.constant dense<0.000000e+00> : vector<16x16xf32>
    %195 = tpu.matmul %190, %192, %cst_49 {dimension_numbers = #tpu.dot_dimension_numbers<[1], [1], [0], [0], [0, 0, 1, 0], [], []>} : vector<16x16xbf16>, vector<16x16xbf16>, vector<16x16xf32> -> vector<16x16xf32>
    %196 = arith.addf %195, %30 : vector<16x16xf32>
    %cst_50 = arith.constant dense<0xFF800000> : vector<16xf32>
    %197 = vector.multi_reduction <maximumf>, %196, %cst_50 [1] : vector<16x16xf32> to vector<16xf32>
    %198 = vector.shape_cast %197 : vector<16xf32> to vector<16x1xf32>
    %199 = vector.broadcast %198 : vector<16x1xf32> to vector<16x16xf32>
    %200 = arith.subf %196, %199 : vector<16x16xf32>
    %201 = math.exp %200 : vector<16x16xf32>
    %cst_51 = arith.constant dense<0.000000e+00> : vector<16xf32>
    %202 = vector.multi_reduction <add>, %201, %cst_51 [1] : vector<16x16xf32> to vector<16xf32>
    %203 = vector.shape_cast %202 : vector<16xf32> to vector<16x1xf32>
    %204 = tpu.reciprocal %203 {approx = true} : vector<16x1xf32> -> vector<16x1xf32>
    %205 = vector.broadcast %204 : vector<16x1xf32> to vector<16x16xf32>
    %206 = arith.mulf %201, %205 : vector<16x16xf32>
    %207 = arith.truncf %206 : vector<16x16xf32> to vector<16x16xbf16>
    %cst_52 = arith.constant dense<0.000000e+00> : vector<16x16xf32>
    %208 = tpu.matmul %207, %194, %cst_52 {dimension_numbers = #tpu.dot_dimension_numbers<[1], [0], [0], [1], [0, 0, 1, 1], [], []>} : vector<16x16xbf16>, vector<16x16xbf16>, vector<16x16xf32> -> vector<16x16xf32>
    %209 = arith.truncf %208 : vector<16x16xf32> to vector<16x16xbf16>
    %210 = vector.extract_strided_slice %188 {offsets = [0, 0], sizes = [16, 128], strides = [1, 1]} : vector<32x128xbf16> to vector<16x128xbf16>
    %cst_53 = arith.constant dense<0.000000e+00> : vector<16x128xf32>
    %211 = tpu.matmul %209, %210, %cst_53 {dimension_numbers = #tpu.dot_dimension_numbers<[1], [0], [0], [1], [0, 0, 1, 1], [], []>} : vector<16x16xbf16>, vector<16x128xbf16>, vector<16x128xf32> -> vector<16x128xf32>
    %212 = vector.extract_strided_slice %187 {offsets = [0, 16], sizes = [16, 16], strides = [1, 1]} : vector<16x128xf32> to vector<16x16xf32>
    %213 = arith.truncf %212 : vector<16x16xf32> to vector<16x16xbf16>
    %214 = vector.extract_strided_slice %187 {offsets = [0, 48], sizes = [16, 16], strides = [1, 1]} : vector<16x128xf32> to vector<16x16xf32>
    %215 = arith.truncf %214 : vector<16x16xf32> to vector<16x16xbf16>
    %216 = vector.extract_strided_slice %187 {offsets = [0, 80], sizes = [16, 16], strides = [1, 1]} : vector<16x128xf32> to vector<16x16xf32>
    %217 = arith.truncf %216 : vector<16x16xf32> to vector<16x16xbf16>
    %cst_54 = arith.constant dense<0.000000e+00> : vector<16x16xf32>
    %218 = tpu.matmul %213, %215, %cst_54 {dimension_numbers = #tpu.dot_dimension_numbers<[1], [1], [0], [0], [0, 0, 1, 0], [], []>} : vector<16x16xbf16>, vector<16x16xbf16>, vector<16x16xf32> -> vector<16x16xf32>
    %219 = arith.addf %218, %30 : vector<16x16xf32>
    %cst_55 = arith.constant dense<0xFF800000> : vector<16xf32>
    %220 = vector.multi_reduction <maximumf>, %219, %cst_55 [1] : vector<16x16xf32> to vector<16xf32>
    %221 = vector.shape_cast %220 : vector<16xf32> to vector<16x1xf32>
    %222 = vector.broadcast %221 : vector<16x1xf32> to vector<16x16xf32>
    %223 = arith.subf %219, %222 : vector<16x16xf32>
    %224 = math.exp %223 : vector<16x16xf32>
    %cst_56 = arith.constant dense<0.000000e+00> : vector<16xf32>
    %225 = vector.multi_reduction <add>, %224, %cst_56 [1] : vector<16x16xf32> to vector<16xf32>
    %226 = vector.shape_cast %225 : vector<16xf32> to vector<16x1xf32>
    %227 = tpu.reciprocal %226 {approx = true} : vector<16x1xf32> -> vector<16x1xf32>
    %228 = vector.broadcast %227 : vector<16x1xf32> to vector<16x16xf32>
    %229 = arith.mulf %224, %228 : vector<16x16xf32>
    %230 = arith.truncf %229 : vector<16x16xf32> to vector<16x16xbf16>
    %cst_57 = arith.constant dense<0.000000e+00> : vector<16x16xf32>
    %231 = tpu.matmul %230, %217, %cst_57 {dimension_numbers = #tpu.dot_dimension_numbers<[1], [0], [0], [1], [0, 0, 1, 1], [], []>} : vector<16x16xbf16>, vector<16x16xbf16>, vector<16x16xf32> -> vector<16x16xf32>
    %232 = arith.truncf %231 : vector<16x16xf32> to vector<16x16xbf16>
    %233 = vector.extract_strided_slice %188 {offsets = [16, 0], sizes = [16, 128], strides = [1, 1]} : vector<32x128xbf16> to vector<16x128xbf16>
    %cst_58 = arith.constant dense<0.000000e+00> : vector<16x128xf32>
    %234 = tpu.matmul %232, %233, %cst_58 {dimension_numbers = #tpu.dot_dimension_numbers<[1], [0], [0], [1], [0, 0, 1, 1], [], []>} : vector<16x16xbf16>, vector<16x128xbf16>, vector<16x128xf32> -> vector<16x128xf32>
    %235 = arith.addf %211, %234 : vector<16x128xf32>
    %236 = vector.extract_strided_slice %0 {offsets = [17, 0], sizes = [1, 128], strides = [1, 1]} : vector<32x128xf32> to vector<1x128xf32>
    %237 = vector.broadcast %236 : vector<1x128xf32> to vector<16x128xf32>
    %238 = arith.addf %235, %237 : vector<16x128xf32>
    %239 = vector.extract_strided_slice %238 {offsets = [0, 0], sizes = [16, 32], strides = [1, 1]} : vector<16x128xf32> to vector<16x32xf32>
    %240 = arith.addf %159, %239 : vector<16x32xf32>
    %241 = vector.extract_strided_slice %0 {offsets = [18, 0], sizes = [1, 32], strides = [1, 1]} : vector<32x128xf32> to vector<1x32xf32>
    %242 = vector.extract_strided_slice %0 {offsets = [19, 0], sizes = [1, 32], strides = [1, 1]} : vector<32x128xf32> to vector<1x32xf32>
    %cst_59 = arith.constant dense<0.000000e+00> : vector<16xf32>
    %243 = vector.multi_reduction <add>, %240, %cst_59 [1] : vector<16x32xf32> to vector<16xf32>
    %244 = vector.shape_cast %243 : vector<16xf32> to vector<16x1xf32>
    %cst_60 = arith.constant 3.200000e+01 : f32
    %245 = vector.broadcast %cst_60 : f32 to vector<16x1xf32>
    %246 = arith.divf %244, %245 : vector<16x1xf32>
    %247 = vector.broadcast %246 : vector<16x1xf32> to vector<16x32xf32>
    %248 = arith.subf %240, %247 : vector<16x32xf32>
    %249 = arith.mulf %248, %248 : vector<16x32xf32>
    %cst_61 = arith.constant dense<0.000000e+00> : vector<16xf32>
    %250 = vector.multi_reduction <add>, %249, %cst_61 [1] : vector<16x32xf32> to vector<16xf32>
    %251 = vector.shape_cast %250 : vector<16xf32> to vector<16x1xf32>
    %cst_62 = arith.constant 3.200000e+01 : f32
    %252 = vector.broadcast %cst_62 : f32 to vector<16x1xf32>
    %253 = arith.divf %251, %252 : vector<16x1xf32>
    %cst_63 = arith.constant 9.99999996E-13 : f32
    %254 = vector.broadcast %cst_63 : f32 to vector<16x1xf32>
    %255 = arith.addf %253, %254 : vector<16x1xf32>
    %256 = math.rsqrt %255 : vector<16x1xf32>
    %257 = vector.broadcast %256 : vector<16x1xf32> to vector<16x32xf32>
    %258 = arith.mulf %248, %257 : vector<16x32xf32>
    %259 = vector.broadcast %241 : vector<1x32xf32> to vector<16x32xf32>
    %260 = arith.mulf %258, %259 : vector<16x32xf32>
    %261 = vector.broadcast %242 : vector<1x32xf32> to vector<16x32xf32>
    %262 = arith.addf %260, %261 : vector<16x32xf32>
    %c0_64 = arith.constant 0 : index
    %c640 = arith.constant 640 : index
    %263 = vector.load %arg2[%c0_64, %c640] : memref<32x896xbf16, #tpu.memory_space<vmem>>, vector<32x128xbf16>
    %264 = arith.truncf %262 : vector<16x32xf32> to vector<16x32xbf16>
    %cst_65 = arith.constant dense<0.000000e+00> : vector<16x128xf32>
    %265 = tpu.matmul %264, %263, %cst_65 {dimension_numbers = #tpu.dot_dimension_numbers<[1], [0], [0], [1], [0, 0, 1, 1], [], []>} : vector<16x32xbf16>, vector<32x128xbf16>, vector<16x128xf32> -> vector<16x128xf32>
    %266 = vector.extract_strided_slice %0 {offsets = [20, 0], sizes = [1, 128], strides = [1, 1]} : vector<32x128xf32> to vector<1x128xf32>
    %267 = vector.broadcast %266 : vector<1x128xf32> to vector<16x128xf32>
    %268 = arith.addf %265, %267 : vector<16x128xf32>
    %269 = arith.mulf %268, %268 : vector<16x128xf32>
    %270 = arith.mulf %268, %269 : vector<16x128xf32>
    %cst_66 = arith.constant 4.471500e-02 : f32
    %271 = vector.broadcast %cst_66 : f32 to vector<16x128xf32>
    %272 = arith.mulf %271, %270 : vector<16x128xf32>
    %273 = arith.addf %268, %272 : vector<16x128xf32>
    %cst_67 = arith.constant 0.797884583 : f32
    %274 = vector.broadcast %cst_67 : f32 to vector<16x128xf32>
    %275 = arith.mulf %274, %273 : vector<16x128xf32>
    %276 = math.tanh %275 : vector<16x128xf32>
    %cst_68 = arith.constant 1.000000e+00 : f32
    %277 = vector.broadcast %cst_68 : f32 to vector<16x128xf32>
    %278 = arith.addf %277, %276 : vector<16x128xf32>
    %cst_69 = arith.constant 5.000000e-01 : f32
    %279 = vector.broadcast %cst_69 : f32 to vector<16x128xf32>
    %280 = arith.mulf %279, %278 : vector<16x128xf32>
    %281 = arith.mulf %268, %280 : vector<16x128xf32>
    %c320 = arith.constant 320 : index
    %c0_70 = arith.constant 0 : index
    %282 = vector.load %arg1[%c320, %c0_70] : memref<448x32xbf16, #tpu.memory_space<vmem>>, vector<128x32xbf16>
    %283 = arith.truncf %281 : vector<16x128xf32> to vector<16x128xbf16>
    %cst_71 = arith.constant dense<0.000000e+00> : vector<16x32xf32>
    %284 = tpu.matmul %283, %282, %cst_71 {dimension_numbers = #tpu.dot_dimension_numbers<[1], [0], [0], [1], [0, 0, 1, 1], [], []>} : vector<16x128xbf16>, vector<128x32xbf16>, vector<16x32xf32> -> vector<16x32xf32>
    %285 = vector.extract_strided_slice %0 {offsets = [21, 0], sizes = [1, 32], strides = [1, 1]} : vector<32x128xf32> to vector<1x32xf32>
    %286 = vector.broadcast %285 : vector<1x32xf32> to vector<16x32xf32>
    %287 = arith.addf %284, %286 : vector<16x32xf32>
    %288 = arith.addf %240, %287 : vector<16x32xf32>
    %289 = vector.extract_strided_slice %288 {offsets = [0, 0], sizes = [1, 32], strides = [1, 1]} : vector<16x32xf32> to vector<1x32xf32>
    %290 = vector.extract_strided_slice %288 {offsets = [8, 0], sizes = [1, 32], strides = [1, 1]} : vector<16x32xf32> to vector<1x32xf32>
    %291 = tpu.concatenate %289, %290 in 0 : vector<1x32xf32>, vector<1x32xf32> -> vector<2x32xf32>
    %292 = vector.extract_strided_slice %0 {offsets = [22, 0], sizes = [1, 32], strides = [1, 1]} : vector<32x128xf32> to vector<1x32xf32>
    %293 = vector.extract_strided_slice %0 {offsets = [23, 0], sizes = [1, 32], strides = [1, 1]} : vector<32x128xf32> to vector<1x32xf32>
    %cst_72 = arith.constant dense<0.000000e+00> : vector<2xf32>
    %294 = vector.multi_reduction <add>, %291, %cst_72 [1] : vector<2x32xf32> to vector<2xf32>
    %295 = vector.shape_cast %294 : vector<2xf32> to vector<2x1xf32>
    %cst_73 = arith.constant 3.200000e+01 : f32
    %296 = vector.broadcast %cst_73 : f32 to vector<2x1xf32>
    %297 = arith.divf %295, %296 : vector<2x1xf32>
    %298 = vector.broadcast %297 : vector<2x1xf32> to vector<2x32xf32>
    %299 = arith.subf %291, %298 : vector<2x32xf32>
    %300 = arith.mulf %299, %299 : vector<2x32xf32>
    %cst_74 = arith.constant dense<0.000000e+00> : vector<2xf32>
    %301 = vector.multi_reduction <add>, %300, %cst_74 [1] : vector<2x32xf32> to vector<2xf32>
    %302 = vector.shape_cast %301 : vector<2xf32> to vector<2x1xf32>
    %cst_75 = arith.constant 3.200000e+01 : f32
    %303 = vector.broadcast %cst_75 : f32 to vector<2x1xf32>
    %304 = arith.divf %302, %303 : vector<2x1xf32>
    %cst_76 = arith.constant 9.99999996E-13 : f32
    %305 = vector.broadcast %cst_76 : f32 to vector<2x1xf32>
    %306 = arith.addf %304, %305 : vector<2x1xf32>
    %307 = math.rsqrt %306 : vector<2x1xf32>
    %308 = vector.broadcast %307 : vector<2x1xf32> to vector<2x32xf32>
    %309 = arith.mulf %299, %308 : vector<2x32xf32>
    %310 = vector.broadcast %292 : vector<1x32xf32> to vector<2x32xf32>
    %311 = arith.mulf %309, %310 : vector<2x32xf32>
    %312 = vector.broadcast %293 : vector<1x32xf32> to vector<2x32xf32>
    %313 = arith.addf %311, %312 : vector<2x32xf32>
    %c0_77 = arith.constant 0 : index
    %c768 = arith.constant 768 : index
    %314 = vector.load %arg2[%c0_77, %c768] : memref<32x896xbf16, #tpu.memory_space<vmem>>, vector<32x128xbf16>
    %315 = arith.truncf %313 : vector<2x32xf32> to vector<2x32xbf16>
    %cst_78 = arith.constant dense<0.000000e+00> : vector<2x128xf32>
    %316 = tpu.matmul %315, %314, %cst_78 {dimension_numbers = #tpu.dot_dimension_numbers<[1], [0], [0], [1], [0, 0, 1, 1], [], []>} : vector<2x32xbf16>, vector<32x128xbf16>, vector<2x128xf32> -> vector<2x128xf32>
    %317 = vector.extract_strided_slice %0 {offsets = [24, 0], sizes = [1, 128], strides = [1, 1]} : vector<32x128xf32> to vector<1x128xf32>
    %318 = vector.broadcast %317 : vector<1x128xf32> to vector<2x128xf32>
    %319 = arith.addf %316, %318 : vector<2x128xf32>
    %c0_79 = arith.constant 0 : index
    %c0_80 = arith.constant 0 : index
    %320 = vector.load %arg4[%c0_79, %c0_80] : memref<2x128xf32, #tpu.memory_space<vmem>>, vector<2x128xf32>
    tpu.vector_store %arg4[%c0_79, %c0_80], %319 {strides = array<i32>} : memref<2x128xf32, #tpu.memory_space<vmem>>, vector<2x128xf32>,
    return
  }
}

</mosaic_0001>

<llo_original>
// kernel: dual_head_vit_forward.1
$region0: #{dual_head_vit_forward.1}
  #allocation0 [shape = 'u32[]', space=smem, size = 0x4, offset = 0x4, fixed_abs, tag = 'smem constant byte address 0x4 - core index']
  #allocation1 [shape = 'u32[144,128]{1,0:T(1,128)}', space=vmem, size = 0x12000, scoped, tag = 'internal scratch']
  %s0 = inlined_call_operand.vmem [shape: f32[8,192], index: 0, kind: input, shape index: {}]
  %s1 = inlined_call_operand.vmem [shape: bf16[448,32], index: 1, kind: input, shape index: {}]
  %s2 = inlined_call_operand.vmem [shape: bf16[32,896], index: 2, kind: input, shape index: {}]
  %s3 = inlined_call_operand.vmem [shape: f32[32,128], index: 3, kind: input, shape index: {}]
  %s4 = inlined_call_operand.vmem [shape: f32[2,128], index: 4, kind: output, shape index: {}]
  %s5 = sld [smem:[#allocation0]]
  $region26: #{dual_head_vit_forward.1} parent=0
    _
  %s7 = ssub.s32 1, %s5
  %s8 = scalar_select 0, %s7, %s5
  // Predicated region
  $region2: #{dual_head_vit_forward.1} parent=0 // pred_check
    _
  $region3: #{dual_head_vit_forward.1} parent=0 // pred_check_branch
    %10 = sbr.rel (0) target = $region5
  $region4: #{dual_head_vit_forward.1} parent=0 // pred_region
    _
  $region5: #{dual_head_vit_forward.1} parent=0 // pred_fallthru
    _
  // Predicated region
  $region6: #{dual_head_vit_forward.1} parent=0 // pred_check
    _
  $region7: #{dual_head_vit_forward.1} parent=0 // pred_check_branch
    %12 = sbr.rel (0) target = $region9
  $region8: #{dual_head_vit_forward.1} parent=0 // pred_region
    _
  $region9: #{dual_head_vit_forward.1} parent=0 // pred_fallthru
    _
  // Predicated region
  $region10: #{dual_head_vit_forward.1} parent=0 // pred_check
    _
  $region11: #{dual_head_vit_forward.1} parent=0 // pred_check_branch
    %14 = sbr.rel (0) target = $region13
  $region12: #{dual_head_vit_forward.1} parent=0 // pred_region
    _
  $region13: #{dual_head_vit_forward.1} parent=0 // pred_fallthru
    _
  // Predicated region
  $region14: #{dual_head_vit_forward.1} parent=0 // pred_check
    _
  $region15: #{dual_head_vit_forward.1} parent=0 // pred_check_branch
    %16 = sbr.rel (0) target = $region17
  $region16: #{dual_head_vit_forward.1} parent=0 // pred_region
    _
  $region17: #{dual_head_vit_forward.1} parent=0 // pred_fallthru
    _
  %v18 = vld [vmem:[%s3] sm:$0xff]
  %v19 = vld [vmem:[%s3 + $0x8] sm:$0xff]
  %v20 = vld [vmem:[%s3 + $0x10] sm:$0xff]
  %v21 = vld [vmem:[%s3 + $0x18] sm:$0xff]
  %v22 = vld [vmem:[%s1] sm:$0xf]
  %v23 = vld [vmem:[%s1 + $0x4] sm:$0xf]
  %v24 = vld [vmem:[%s1 + $0x8] sm:$0xf]
  %v25 = vld [vmem:[%s1 + $0xc] sm:$0xf]
  %v26 = vld [vmem:[%s1 + $0x10] sm:$0xf]
  %v27 = vld [vmem:[%s1 + $0x14] sm:$0xf]
  %v28 = vld [vmem:[%s1 + $0x18] sm:$0xf]
  %v29 = vld [vmem:[%s1 + $0x1c] sm:$0xf]
  %v30 = vld [vmem:[%s1 + $0x20] sm:$0xf]
  %v31 = vld [vmem:[%s1 + $0x24] sm:$0xf]
  %v32 = vld [vmem:[%s1 + $0x28] sm:$0xf]
  %v33 = vld [vmem:[%s1 + $0x2c] sm:$0xf]
  %v34 = vld [vmem:[%s1 + $0x30] sm:$0xf]
  %v35 = vld [vmem:[%s1 + $0x34] sm:$0xf]
  %v36 = vld [vmem:[%s1 + $0x38] sm:$0xf]
  %v37 = vld [vmem:[%s1 + $0x3c] sm:$0xf]
  %v38 = vld [vmem:[%s1 + $0x40] sm:$0xf]
  %v39 = vld [vmem:[%s1 + $0x44] sm:$0xf]
  %v40 = vld [vmem:[%s1 + $0x48] sm:$0xf]
  %v41 = vld [vmem:[%s1 + $0x4c] sm:$0xf]
  %v42 = vld [vmem:[%s1 + $0x50] sm:$0xf]
  %v43 = vld [vmem:[%s1 + $0x54] sm:$0xf]
  %v44 = vld [vmem:[%s1 + $0x58] sm:$0xf]
  %v45 = vld [vmem:[%s1 + $0x5c] sm:$0xf]
  %v46 = vld [vmem:[%s0] sm:$0xff]
  %v47 = vld [vmem:[%s0 + $0x8] sm:$0xff]
  %v48 = vpack.c.bf16 %v46, %v46
  %v49 = vpack.c.bf16 %v47, %v47
  %v50 = vlaneseq
  %v51 = vshrl.u32 %v50, 7
  %v52 = vsub.s32 0, %v51
  %v53 = vrot.slane %v18, %v52
  %v78 = vunpack.c.l.b16 %v22
  %v79 = vunpack.c.l.b16 %v23
  %v80 = vunpack.c.l.b16 %v24
  %v81 = vunpack.c.l.b16 %v25
  %v82 = vunpack.c.l.b16 %v26
  %v83 = vunpack.c.l.b16 %v27
  %v84 = vunpack.c.l.b16 %v28
  %v85 = vunpack.c.l.b16 %v29
  %v86 = vunpack.c.l.b16 %v30
  %v87 = vunpack.c.l.b16 %v31
  %v88 = vunpack.c.l.b16 %v32
  %v89 = vunpack.c.l.b16 %v33
  %v90 = vunpack.c.l.b16 %v34
  %v91 = vunpack.c.l.b16 %v35
  %v92 = vunpack.c.l.b16 %v36
  %v93 = vunpack.c.l.b16 %v37
  %v94 = vunpack.c.l.b16 %v38
  %v95 = vunpack.c.l.b16 %v39
  %v96 = vunpack.c.l.b16 %v40
  %v97 = vunpack.c.l.b16 %v41
  %v98 = vunpack.c.l.b16 %v42
  %v99 = vunpack.c.l.b16 %v43
  %v100 = vunpack.c.l.b16 %v44
  %v101 = vunpack.c.l.b16 %v45
  %v102 = vpack.c.b16 %v79, %v78
  %v103 = vpack.c.b16 %v81, %v80
  %v104 = vpack.c.b16 %v83, %v82
  %v105 = vpack.c.b16 %v85, %v84
  %v106 = vpack.c.b16 %v87, %v86
  %v107 = vpack.c.b16 %v89, %v88
  %v108 = vpack.c.b16 %v91, %v90
  %v109 = vpack.c.b16 %v93, %v92
  %v110 = vpack.c.b16 %v95, %v94
  %v111 = vpack.c.b16 %v97, %v96
  %v112 = vpack.c.b16 %v99, %v98
  %v113 = vpack.c.b16 %v101, %v100
  %vm126 = vcmask 523264
  %v128 = vsel %vm126, %v49, 0
  %130 = vmatprep.subr.bf16.mxu0 0
  %131 = vmatpush1.bf16.msra.mxu0 %v102
  %132 = vmatprep.subr.bf16.mxu0 0
  %133 = vmatpush1.bf16.msra.mxu0 %v103
  %134 = vmatprep.subr.bf16.mxu0 0
  %135 = vmatpush1.bf16.msra.mxu0 %v104
  %136 = vmatprep.subr.bf16.mxu0 0
  %137 = vmatpush1.bf16.msra.mxu0 %v105
  %138 = vmatprep.subr.bf16.mxu0 0
  %139 = vmatpush1.bf16.msra.mxu0 %v106
  %140 = vmatprep.subr.bf16.mxu0 0
  %141 = vmatpush1.bf16.msra.mxu0 %v107
  %142 = vmatprep.subr.bf16.mxu0 0
  %143 = vmatpush1.bf16.msra.mxu0 %v108
  %144 = vmatprep.subr.bf16.mxu0 0
  %145 = vmatpush1.bf16.msra.mxu0 %v109
  %146 = vmatprep.subr.bf16.mxu0 0
  %147 = vmatpush1.bf16.msra.mxu0 %v110
  %148 = vmatprep.subr.bf16.mxu0 0
  %149 = vmatpush1.bf16.msra.mxu0 %v111
  %150 = vmatprep.subr.bf16.mxu0 0
  %151 = vmatpush1.bf16.msra.mxu0 %v112
  %152 = vmatprep.subr.bf16.mxu0 0
  %153 = vmatpush1.bf16.msra.mxu0 %v113
  %154 = vmatprep.subr.bf16.mxu0 0
  %155 = vmatpush1.bf16.msra.mxu0 0
  %156 = vmatprep.subr.bf16.mxu0 0
  %157 = vmatpush1.bf16.msra.mxu0 0
  %158 = vmatprep.subr.bf16.mxu0 0
  %159 = vmatpush1.bf16.msra.mxu0 0
  %160 = vmatprep.subr.bf16.mxu0 0
  %161 = vmatpush1.bf16.msra.mxu0 0
  %162 = vmatprep.mubr.bf16.mxu0 %v128
  %163 = vmatmul.mubr.bf16.gmra.mrb[0].mxu0 %v48
  %v164 = vpop.f32.mrb[0].mxu0
  %v165 = vadd.f32 %v53, %v164
  %v166 = vpop.f32.mrb[0].mxu0
  %v167 = vpop.f32.mrb[0].mxu0
  %v168 = vpop.f32.mrb[0].mxu0
  %169 = vdwg.mxu0
  %v171 = vrot.slane %v18, 2
  %v173 = vadd.f32 %v165, %v171
  %v174 = vrot.slane %v18, 6
  %v176 = vadd.f32 %v165, %v174
  %v177 = vrot.slane %v18, 1
  %v180 = vrot.slane %v173, 7
  %v183 = vrot.slane %v176, 3
  %vm185 = vcmask 1040384
  %v186 = vsel %vm185, %v177, %v180
  %vm187 = vcmask 1044480
  %v188 = vsel %vm187, %v186, 0.0
  %v189 = vsel %vm185, %v177, %v183
  %v190 = vsel %vm187, %v189, 0.0
  %v191 = vlaneseq
  %v192 = vshrl.u32 %v191, 7
  %v193 = vadd.s32 %v192, 8
  %v194 = vlaneseq
  %v195 = vand.u32 %v194, 127
  %v196 = vshra.s32 %v192, 3
  %v197 = vshra.s32 %v193, 3
  %v198 = vshra.s32 %v195, 3
  %vm199 = vcmp.eq.s32.totalorder %v196, %v198
  %vm200 = vcmp.eq.s32.totalorder %v197, %v198
  %v201 = vand.u32 %v195, 7
  %vm202 = vcmp.lt.s32.totalorder %v201, 5
  %vm203 = vmand %vm199, %vm202
  %vm204 = vmand %vm200, %vm202
  %v205 = vsel %vm203, 0.0, -1e+30
  %v206 = vsel %vm204, 0.0, -1e+30
  %vm207 = vcmask 261120
  %v208 = vsel %vm207, %v188, 0.0
  %209 = vadd.xlane.f32.xlu0 %v208
  %v210 = vpop.xlane.xlu0 %209
  %v211 = vsel %vm207, %v190, 0.0
  %212 = vadd.xlane.f32.xlu0 %v211
  %v213 = vpop.xlane.xlu0 %212
  %v214 = vrcp.pop 32.0
  %v215 = vmul.f32 %v210, %v214
  %v216 = vmul.f32 %v213, %v214
  %v217 = vsub.f32 %v188, %v215
  %v218 = vsub.f32 %v190, %v216
  %v219 = vmul.f32 %v217, %v217
  %v220 = vmul.f32 %v218, %v218
  %v221 = vsel %vm207, %v219, 0.0
  %222 = vadd.xlane.f32.xlu0 %v221
  %v223 = vpop.xlane.xlu0 %222
  %v224 = vsel %vm207, %v220, 0.0
  %225 = vadd.xlane.f32.xlu0 %v224
  %v226 = vpop.xlane.xlu0 %225
  %v227 = vmul.f32 %v223, %v214
  %v228 = vmul.f32 %v226, %v214
  %v229 = vadd.f32 %v227, 1e-12
  %v230 = vadd.f32 %v228, 1e-12
  %v231 = vrsqrt.pop %v229
  %v232 = vrsqrt.pop %v230
  %v233 = vmul.f32 %v217, %v231
  %v234 = vmul.f32 %v218, %v232
  %v235 = vlaneseq
  %v236 = vshrl.u32 %v235, 7
  %v237 = vsub.s32 6, %v236
  %v238 = vrot.slane %v18, %v237
  %v239 = vmul.f32 %v233, %v238
  %v240 = vmul.f32 %v234, %v238
  %v241 = vlaneseq
  %v242 = vshrl.u32 %v241, 7
  %v243 = vsub.s32 7, %v242
  %v244 = vrot.slane %v18, %v243
  %v245 = vadd.f32 %v239, %v244
  %v246 = vadd.f32 %v240, %v244
  %v247 = vld [vmem:[%s2] sm:$0xf]
  %v248 = vld [vmem:[%s2 + $0x1c] sm:$0xf]
  %v249 = vld [vmem:[%s2 + $0x38] sm:$0xf]
  %v250 = vld [vmem:[%s2 + $0x54] sm:$0xf]
  %v251 = vpack.c.bf16 %v246, %v245
  %v252 = vlaneseq
  %v253 = vshrl.u32 %v252, 7
  %v254 = vsub.s32 0, %v253
  %v255 = vrot.slane %v19, %v254
  %v260 = vunpack.c.l.b16 %v247
  %v261 = vunpack.c.l.b16 %v248
  %v262 = vunpack.c.l.b16 %v249
  %v263 = vunpack.c.l.b16 %v250
  %v264 = vpack.c.b16 %v261, %v260
  %v265 = vpack.c.b16 %v263, %v262
  %v269 = vsel %vm207, %v251, 0
  %271 = vmatprep.subr.bf16.mxu0 0
  %272 = vmatpush1.bf16.msra.mxu0 %v264
  %273 = vmatprep.subr.bf16.mxu0 0
  %274 = vmatpush1.bf16.msra.mxu0 %v265
  %275 = vmatprep.subr.bf16.mxu0 0
  %276 = vmatpush1.bf16.msra.mxu0 0
  %277 = vmatprep.subr.bf16.mxu0 0
  %278 = vmatpush1.bf16.msra.mxu0 0
  %279 = vmatprep.subr.bf16.mxu0 0
  %280 = vmatpush1.bf16.msra.mxu0 0
  %281 = vmatprep.subr.bf16.mxu0 0
  %282 = vmatpush1.bf16.msra.mxu0 0
  %283 = vmatprep.subr.bf16.mxu0 0
  %284 = vmatpush1.bf16.msra.mxu0 0
  %285 = vmatprep.subr.bf16.mxu0 0
  %286 = vmatpush1.bf16.msra.mxu0 0
  %287 = vmatprep.subr.bf16.mxu0 0
  %288 = vmatpush1.bf16.msra.mxu0 0
  %289 = vmatprep.subr.bf16.mxu0 0
  %290 = vmatpush1.bf16.msra.mxu0 0
  %291 = vmatprep.subr.bf16.mxu0 0
  %292 = vmatpush1.bf16.msra.mxu0 0
  %293 = vmatprep.subr.bf16.mxu0 0
  %294 = vmatpush1.bf16.msra.mxu0 0
  %295 = vmatprep.subr.bf16.mxu0 0
  %296 = vmatpush1.bf16.msra.mxu0 0
  %297 = vmatprep.subr.bf16.mxu0 0
  %298 = vmatpush1.bf16.msra.mxu0 0
  %299 = vmatprep.subr.bf16.mxu0 0
  %300 = vmatpush1.bf16.msra.mxu0 0
  %301 = vmatprep.subr.bf16.mxu0 0
  %302 = vmatpush1.bf16.msra.mxu0 0
  %303 = vmatprep.mubr.bf16.mxu0 0
  %304 = vmatmul.mubr.bf16.gmra.mrb[0].mxu0 %v269
  %v305 = vpop.f32.mrb[0].mxu0
  %v306 = vadd.f32 %v255, %v305
  %v307 = vpop.f32.mrb[0].mxu0
  %v308 = vpop.f32.mrb[0].mxu0
  %v309 = vadd.f32 %v255, %v308
  %v310 = vpop.f32.mrb[0].mxu0
  %311 = vdwg.mxu0
  %v312 = vld [vmem:[%s2 + $0x8] sm:$0xf]
  %v313 = vld [vmem:[%s2 + $0x24] sm:$0xf]
  %v314 = vld [vmem:[%s2 + $0x40] sm:$0xf]
  %v315 = vld [vmem:[%s2 + $0x5c] sm:$0xf]
  %v316 = vpack.c.bf16 %v309, %v306
  %318 = vrot.lane.b32.xlu0 %v316, 96
  %v319 = vpop.permute.xlu0 %318
  %vm320 = vcmask 130048
  %v322 = vsel %vm320, %v316, 0
  %v325 = vsel %vm320, %v319, 0
  %327 = vmatprep.subr.bf16.mxu0 0
  %328 = vmatpush1.bf16.xpose.msra.mxu0 %v325
  %329 = vmatprep.subr.bf16.mxu0 0
  %330 = vmatpush1.bf16.xpose.msra.mxu0 0
  %331 = vmatprep.subr.bf16.mxu0 0
  %332 = vmatpush1.bf16.xpose.msra.mxu0 0
  %333 = vmatprep.subr.bf16.mxu0 0
  %334 = vmatpush1.bf16.xpose.msra.mxu0 0
  %335 = vmatprep.subr.bf16.mxu0 0
  %336 = vmatpush1.bf16.xpose.msra.mxu0 0
  %337 = vmatprep.subr.bf16.mxu0 0
  %338 = vmatpush1.bf16.xpose.msra.mxu0 0
  %339 = vmatprep.subr.bf16.mxu0 0
  %340 = vmatpush1.bf16.xpose.msra.mxu0 0
  %341 = vmatprep.subr.bf16.mxu0 0
  %342 = vmatpush1.bf16.xpose.msra.mxu0 0
  %343 = vmatprep.subr.bf16.mxu0 0
  %344 = vmatpush1.bf16.xpose.msra.mxu0 0
  %345 = vmatprep.subr.bf16.mxu0 0
  %346 = vmatpush1.bf16.xpose.msra.mxu0 0
  %347 = vmatprep.subr.bf16.mxu0 0
  %348 = vmatpush1.bf16.xpose.msra.mxu0 0
  %349 = vmatprep.subr.bf16.mxu0 0
  %350 = vmatpush1.bf16.xpose.msra.mxu0 0
  %351 = vmatprep.subr.bf16.mxu0 0
  %352 = vmatpush1.bf16.xpose.msra.mxu0 0
  %353 = vmatprep.subr.bf16.mxu0 0
  %354 = vmatpush1.bf16.xpose.msra.mxu0 0
  %355 = vmatprep.subr.bf16.mxu0 0
  %356 = vmatpush1.bf16.xpose.msra.mxu0 0
  %357 = vmatprep.subr.bf16.mxu0 0
  %358 = vmatpush1.bf16.xpose.msra.mxu0 0
  %359 = vmatprep.mubr.bf16.mxu0 0
  %360 = vmatmul.mubr.bf16.gmra.mrb[0].mxu0 %v322
  %v361 = vpop.f32.mrb[0].mxu0
  %v362 = vadd.f32 %v205, %v361
  %v363 = vpop.f32.mrb[0].mxu0
  %v364 = vpop.f32.mrb[0].mxu0
  %v365 = vadd.f32 %v206, %v364
  %v366 = vpop.f32.mrb[0].mxu0
  %367 = vdwg.mxu0
  %v368 = vsel %vm320, %v362, -inf
  %369 = vmax.xlane.f32.xlu0 %v368
  %v370 = vpop.xlane.xlu0 %369
  %v371 = vsel %vm320, %v365, -inf
  %372 = vmax.xlane.f32.xlu0 %v371
  %v373 = vpop.xlane.xlu0 %372
  %v374 = vsub.f32 %v362, %v370
  %v375 = vsub.f32 %v365, %v373
  %v376 = vmul.f32 %v374, 1.442695
  %v377 = vpow.pop %v376
  %v378 = vmul.f32 %v375, 1.442695
  %v379 = vpow.pop %v378
  %v380 = vsel %vm320, %v377, 0.0
  %381 = vadd.xlane.f32.xlu0 %v380
  %v382 = vpop.xlane.xlu0 %381
  %v383 = vsel %vm320, %v379, 0.0
  %384 = vadd.xlane.f32.xlu0 %v383
  %v385 = vpop.xlane.xlu0 %384
  %v386 = vrcp.pop %v382
  %v387 = vrcp.pop %v385
  %v388 = vmul.f32 %v377, %v386
  %v389 = vmul.f32 %v379, %v387
  %v390 = vpack.c.bf16 %v389, %v388
  %391 = vrot.lane.b32.xlu0 %v316, 64
  %v392 = vpop.permute.xlu0 %391
  %v395 = vsel %vm320, %v390, 0
  %397 = vmatprep.subr.bf16.mxu0 0
  %398 = vmatpush1.bf16.msra.mxu0 %v392
  %399 = vmatprep.subr.bf16.mxu0 0
  %400 = vmatpush1.bf16.msra.mxu0 0
  %401 = vmatprep.subr.bf16.mxu0 0
  %402 = vmatpush1.bf16.msra.mxu0 0
  %403 = vmatprep.subr.bf16.mxu0 0
  %404 = vmatpush1.bf16.msra.mxu0 0
  %405 = vmatprep.subr.bf16.mxu0 0
  %406 = vmatpush1.bf16.msra.mxu0 0
  %407 = vmatprep.subr.bf16.mxu0 0
  %408 = vmatpush1.bf16.msra.mxu0 0
  %409 = vmatprep.subr.bf16.mxu0 0
  %410 = vmatpush1.bf16.msra.mxu0 0
  %411 = vmatprep.subr.bf16.mxu0 0
  %412 = vmatpush1.bf16.msra.mxu0 0
  %413 = vmatprep.subr.bf16.mxu0 0
  %414 = vmatpush1.bf16.msra.mxu0 0
  %415 = vmatprep.subr.bf16.mxu0 0
  %416 = vmatpush1.bf16.msra.mxu0 0
  %417 = vmatprep.subr.bf16.mxu0 0
  %418 = vmatpush1.bf16.msra.mxu0 0
  %419 = vmatprep.subr.bf16.mxu0 0
  %420 = vmatpush1.bf16.msra.mxu0 0
  %421 = vmatprep.subr.bf16.mxu0 0
  %422 = vmatpush1.bf16.msra.mxu0 0
  %423 = vmatprep.subr.bf16.mxu0 0
  %424 = vmatpush1.bf16.msra.mxu0 0
  %425 = vmatprep.subr.bf16.mxu0 0
  %426 = vmatpush1.bf16.msra.mxu0 0
  %427 = vmatprep.subr.bf16.mxu0 0
  %428 = vmatpush1.bf16.msra.mxu0 0
  %429 = vmatprep.mubr.bf16.mxu0 0
  %430 = vmatmul.mubr.bf16.gmra.mrb[0].mxu0 %v395
  %v431 = vpop.f32.mrb[0].mxu0
  %v432 = vadd.f32 0.0, %v431
  %v433 = vpop.f32.mrb[0].mxu0
  %v434 = vpop.f32.mrb[0].mxu0
  %v435 = vadd.f32 0.0, %v434
  %v436 = vpop.f32.mrb[0].mxu0
  %437 = vdwg.mxu0
  %v438 = vpack.c.bf16 %v435, %v432
  %439 = vrot.lane.b32.xlu0 %v316, 112
  %v440 = vpop.permute.xlu0 %439
  %441 = vrot.lane.b32.xlu0 %v316, 80
  %v442 = vpop.permute.xlu0 %441
  %v444 = vsel %vm320, %v440, 0
  %v447 = vsel %vm320, %v442, 0
  %449 = vmatprep.subr.bf16.mxu0 0
  %450 = vmatpush1.bf16.xpose.msra.mxu0 %v447
  %451 = vmatprep.subr.bf16.mxu0 0
  %452 = vmatpush1.bf16.xpose.msra.mxu0 0
  %453 = vmatprep.subr.bf16.mxu0 0
  %454 = vmatpush1.bf16.xpose.msra.mxu0 0
  %455 = vmatprep.subr.bf16.mxu0 0
  %456 = vmatpush1.bf16.xpose.msra.mxu0 0
  %457 = vmatprep.subr.bf16.mxu0 0
  %458 = vmatpush1.bf16.xpose.msra.mxu0 0
  %459 = vmatprep.subr.bf16.mxu0 0
  %460 = vmatpush1.bf16.xpose.msra.mxu0 0
  %461 = vmatprep.subr.bf16.mxu0 0
  %462 = vmatpush1.bf16.xpose.msra.mxu0 0
  %463 = vmatprep.subr.bf16.mxu0 0
  %464 = vmatpush1.bf16.xpose.msra.mxu0 0
  %465 = vmatprep.subr.bf16.mxu0 0
  %466 = vmatpush1.bf16.xpose.msra.mxu0 0
  %467 = vmatprep.subr.bf16.mxu0 0
  %468 = vmatpush1.bf16.xpose.msra.mxu0 0
  %469 = vmatprep.subr.bf16.mxu0 0
  %470 = vmatpush1.bf16.xpose.msra.mxu0 0
  %471 = vmatprep.subr.bf16.mxu0 0
  %472 = vmatpush1.bf16.xpose.msra.mxu0 0
  %473 = vmatprep.subr.bf16.mxu0 0
  %474 = vmatpush1.bf16.xpose.msra.mxu0 0
  %475 = vmatprep.subr.bf16.mxu0 0
  %476 = vmatpush1.bf16.xpose.msra.mxu0 0
  %477 = vmatprep.subr.bf16.mxu0 0
  %478 = vmatpush1.bf16.xpose.msra.mxu0 0
  %479 = vmatprep.subr.bf16.mxu0 0
  %480 = vmatpush1.bf16.xpose.msra.mxu0 0
  %481 = vmatprep.mubr.bf16.mxu0 0
  %482 = vmatmul.mubr.bf16.gmra.mrb[0].mxu0 %v444
  %v483 = vpop.f32.mrb[0].mxu0
  %v484 = vadd.f32 %v205, %v483
  %v485 = vpop.f32.mrb[0].mxu0
  %v486 = vpop.f32.mrb[0].mxu0
  %v487 = vadd.f32 %v206, %v486
  %v488 = vpop.f32.mrb[0].mxu0
  %489 = vdwg.mxu0
  %v490 = vsel %vm320, %v484, -inf
  %491 = vmax.xlane.f32.xlu0 %v490
  %v492 = vpop.xlane.xlu0 %491
  %v493 = vsel %vm320, %v487, -inf
  %494 = vmax.xlane.f32.xlu0 %v493
  %v495 = vpop.xlane.xlu0 %494
  %v496 = vsub.f32 %v484, %v492
  %v497 = vsub.f32 %v487, %v495
  %v498 = vmul.f32 %v496, 1.442695
  %v499 = vpow.pop %v498
  %v500 = vmul.f32 %v497, 1.442695
  %v501 = vpow.pop %v500
  %v502 = vsel %vm320, %v499, 0.0
  %503 = vadd.xlane.f32.xlu0 %v502
  %v504 = vpop.xlane.xlu0 %503
  %v505 = vsel %vm320, %v501, 0.0
  %506 = vadd.xlane.f32.xlu0 %v505
  %v507 = vpop.xlane.xlu0 %506
  %v508 = vrcp.pop %v504
  %v509 = vrcp.pop %v507
  %v510 = vmul.f32 %v499, %v508
  %v511 = vmul.f32 %v501, %v509
  %v512 = vpack.c.bf16 %v511, %v510
  %513 = vrot.lane.b32.xlu0 %v316, 48
  %v514 = vpop.permute.xlu0 %513
  %v517 = vsel %vm320, %v512, 0
  %519 = vmatprep.subr.bf16.mxu0 0
  %520 = vmatpush1.bf16.msra.mxu0 %v514
  %521 = vmatprep.subr.bf16.mxu0 0
  %522 = vmatpush1.bf16.msra.mxu0 0
  %523 = vmatprep.subr.bf16.mxu0 0
  %524 = vmatpush1.bf16.msra.mxu0 0
  %525 = vmatprep.subr.bf16.mxu0 0
  %526 = vmatpush1.bf16.msra.mxu0 0
  %527 = vmatprep.subr.bf16.mxu0 0
  %528 = vmatpush1.bf16.msra.mxu0 0
  %529 = vmatprep.subr.bf16.mxu0 0
  %530 = vmatpush1.bf16.msra.mxu0 0
  %531 = vmatprep.subr.bf16.mxu0 0
  %532 = vmatpush1.bf16.msra.mxu0 0
  %533 = vmatprep.subr.bf16.mxu0 0
  %534 = vmatpush1.bf16.msra.mxu0 0
  %535 = vmatprep.subr.bf16.mxu0 0
  %536 = vmatpush1.bf16.msra.mxu0 0
  %537 = vmatprep.subr.bf16.mxu0 0
  %538 = vmatpush1.bf16.msra.mxu0 0
  %539 = vmatprep.subr.bf16.mxu0 0
  %540 = vmatpush1.bf16.msra.mxu0 0
  %541 = vmatprep.subr.bf16.mxu0 0
  %542 = vmatpush1.bf16.msra.mxu0 0
  %543 = vmatprep.subr.bf16.mxu0 0
  %544 = vmatpush1.bf16.msra.mxu0 0
  %545 = vmatprep.subr.bf16.mxu0 0
  %546 = vmatpush1.bf16.msra.mxu0 0
  %547 = vmatprep.subr.bf16.mxu0 0
  %548 = vmatpush1.bf16.msra.mxu0 0
  %549 = vmatprep.subr.bf16.mxu0 0
  %550 = vmatpush1.bf16.msra.mxu0 0
  %551 = vmatprep.mubr.bf16.mxu0 0
  %552 = vmatmul.mubr.bf16.gmra.mrb[0].mxu0 %v517
  %v553 = vpop.f32.mrb[0].mxu0
  %v554 = vadd.f32 0.0, %v553
  %v555 = vpop.f32.mrb[0].mxu0
  %v556 = vpop.f32.mrb[0].mxu0
  %v557 = vadd.f32 0.0, %v556
  %v558 = vpop.f32.mrb[0].mxu0
  %559 = vdwg.mxu0
  %v560 = vpack.c.bf16 %v557, %v554
  %v563 = vunpack.c.l.b16 %v314
  %v564 = vunpack.c.l.b16 %v315
  %v565 = vpack.c.b16 %v564, %v563
  %v568 = vsel %vm320, %v560, 0
  %570 = vmatprep.subr.bf16.mxu0 0
  %571 = vmatpush1.bf16.msra.mxu0 %v565
  %572 = vmatprep.subr.bf16.mxu0 0
  %573 = vmatpush1.bf16.msra.mxu0 0
  %574 = vmatprep.subr.bf16.mxu0 0
  %575 = vmatpush1.bf16.msra.mxu0 0
  %576 = vmatprep.subr.bf16.mxu0 0
  %577 = vmatpush1.bf16.msra.mxu0 0
  %578 = vmatprep.subr.bf16.mxu0 0
  %579 = vmatpush1.bf16.msra.mxu0 0
  %580 = vmatprep.subr.bf16.mxu0 0
  %581 = vmatpush1.bf16.msra.mxu0 0
  %582 = vmatprep.subr.bf16.mxu0 0
  %583 = vmatpush1.bf16.msra.mxu0 0
  %584 = vmatprep.subr.bf16.mxu0 0
  %585 = vmatpush1.bf16.msra.mxu0 0
  %586 = vmatprep.subr.bf16.mxu0 0
  %587 = vmatpush1.bf16.msra.mxu0 0
  %588 = vmatprep.subr.bf16.mxu0 0
  %589 = vmatpush1.bf16.msra.mxu0 0
  %590 = vmatprep.subr.bf16.mxu0 0
  %591 = vmatpush1.bf16.msra.mxu0 0
  %592 = vmatprep.subr.bf16.mxu0 0
  %593 = vmatpush1.bf16.msra.mxu0 0
  %594 = vmatprep.subr.bf16.mxu0 0
  %595 = vmatpush1.bf16.msra.mxu0 0
  %596 = vmatprep.subr.bf16.mxu0 0
  %597 = vmatpush1.bf16.msra.mxu0 0
  %598 = vmatprep.subr.bf16.mxu0 0
  %599 = vmatpush1.bf16.msra.mxu0 0
  %600 = vmatprep.subr.bf16.mxu0 0
  %601 = vmatpush1.bf16.msra.mxu0 0
  %602 = vmatprep.mubr.bf16.mxu0 0
  %603 = vmatmul.mubr.bf16.gmra.mrb[0].mxu0 %v568
  %v604 = vpop.f32.mrb[0].mxu0
  %v605 = vadd.f32 0.0, %v604
  %v606 = vpop.f32.mrb[0].mxu0
  %v607 = vpop.f32.mrb[0].mxu0
  %v608 = vadd.f32 0.0, %v607
  %v609 = vpop.f32.mrb[0].mxu0
  %610 = vdwg.mxu0
  %v613 = vunpack.c.l.b16 %v312
  %v614 = vunpack.c.l.b16 %v313
  %v615 = vpack.c.b16 %v614, %v613
  %v618 = vsel %vm320, %v438, 0
  %620 = vmatprep.subr.bf16.mxu0 0
  %621 = vmatpush1.bf16.msra.mxu0 %v615
  %622 = vmatprep.subr.bf16.mxu0 0
  %623 = vmatpush1.bf16.msra.mxu0 0
  %624 = vmatprep.subr.bf16.mxu0 0
  %625 = vmatpush1.bf16.msra.mxu0 0
  %626 = vmatprep.subr.bf16.mxu0 0
  %627 = vmatpush1.bf16.msra.mxu0 0
  %628 = vmatprep.subr.bf16.mxu0 0
  %629 = vmatpush1.bf16.msra.mxu0 0
  %630 = vmatprep.subr.bf16.mxu0 0
  %631 = vmatpush1.bf16.msra.mxu0 0
  %632 = vmatprep.subr.bf16.mxu0 0
  %633 = vmatpush1.bf16.msra.mxu0 0
  %634 = vmatprep.subr.bf16.mxu0 0
  %635 = vmatpush1.bf16.msra.mxu0 0
  %636 = vmatprep.subr.bf16.mxu0 0
  %637 = vmatpush1.bf16.msra.mxu0 0
  %638 = vmatprep.subr.bf16.mxu0 0
  %639 = vmatpush1.bf16.msra.mxu0 0
  %640 = vmatprep.subr.bf16.mxu0 0
  %641 = vmatpush1.bf16.msra.mxu0 0
  %642 = vmatprep.subr.bf16.mxu0 0
  %643 = vmatpush1.bf16.msra.mxu0 0
  %644 = vmatprep.subr.bf16.mxu0 0
  %645 = vmatpush1.bf16.msra.mxu0 0
  %646 = vmatprep.subr.bf16.mxu0 0
  %647 = vmatpush1.bf16.msra.mxu0 0
  %648 = vmatprep.subr.bf16.mxu0 0
  %649 = vmatpush1.bf16.msra.mxu0 0
  %650 = vmatprep.subr.bf16.mxu0 0
  %651 = vmatpush1.bf16.msra.mxu0 0
  %652 = vmatprep.mubr.bf16.mxu0 0
  %653 = vmatmul.mubr.bf16.gmra.mrb[0].mxu0 %v618
  %v654 = vpop.f32.mrb[0].mxu0
  %v655 = vadd.f32 %v605, %v654
  %v656 = vpop.f32.mrb[0].mxu0
  %v657 = vpop.f32.mrb[0].mxu0
  %v658 = vadd.f32 %v608, %v657
  %v659 = vpop.f32.mrb[0].mxu0
  %660 = vdwg.mxu0
  %v661 = vlaneseq
  %v662 = vshrl.u32 %v661, 7
  %v663 = vsub.s32 1, %v662
  %v664 = vrot.slane %v19, %v663
  %v665 = vadd.f32 %v655, %v664
  %v666 = vadd.f32 %v658, %v664
  %v667 = vadd.f32 %v188, %v665
  %v668 = vadd.f32 %v190, %v666
  %v669 = vsel %vm207, %v667, 0.0
  %670 = vadd.xlane.f32.xlu0 %v669
  %v671 = vpop.xlane.xlu0 %670
  %v672 = vsel %vm207, %v668, 0.0
  %673 = vadd.xlane.f32.xlu0 %v672
  %v674 = vpop.xlane.xlu0 %673
  %v675 = vmul.f32 %v671, %v214
  %v676 = vmul.f32 %v674, %v214
  %v677 = vsub.f32 %v667, %v675
  %v678 = vsub.f32 %v668, %v676
  %v679 = vmul.f32 %v677, %v677
  %v680 = vmul.f32 %v678, %v678
  %v681 = vsel %vm207, %v679, 0.0
  %682 = vadd.xlane.f32.xlu0 %v681
  %v683 = vpop.xlane.xlu0 %682
  %v684 = vsel %vm207, %v680, 0.0
  %685 = vadd.xlane.f32.xlu0 %v684
  %v686 = vpop.xlane.xlu0 %685
  %v687 = vmul.f32 %v683, %v214
  %v688 = vmul.f32 %v686, %v214
  %v689 = vadd.f32 %v687, 1e-12
  %v690 = vadd.f32 %v688, 1e-12
  %v691 = vrsqrt.pop %v689
  %v692 = vrsqrt.pop %v690
  %v693 = vmul.f32 %v677, %v691
  %v694 = vmul.f32 %v678, %v692
  %v695 = vlaneseq
  %v696 = vshrl.u32 %v695, 7
  %v697 = vsub.s32 2, %v696
  %v698 = vrot.slane %v19, %v697
  %v699 = vmul.f32 %v693, %v698
  %v700 = vmul.f32 %v694, %v698
  %v701 = vlaneseq
  %v702 = vshrl.u32 %v701, 7
  %v703 = vsub.s32 3, %v702
  %v704 = vrot.slane %v19, %v703
  %v705 = vadd.f32 %v699, %v704
  %v706 = vadd.f32 %v700, %v704
  %v707 = vld [vmem:[%s2 + $0x10] sm:$0xf]
  %v708 = vld [vmem:[%s2 + $0x2c] sm:$0xf]
  %v709 = vld [vmem:[%s2 + $0x48] sm:$0xf]
  %v710 = vld [vmem:[%s2 + $0x64] sm:$0xf]
  %v711 = vpack.c.bf16 %v706, %v705
  %v712 = vlaneseq
  %v713 = vshrl.u32 %v712, 7
  %v714 = vsub.s32 4, %v713
  %v715 = vrot.slane %v19, %v714
  %v720 = vunpack.c.l.b16 %v707
  %v721 = vunpack.c.l.b16 %v708
  %v722 = vunpack.c.l.b16 %v709
  %v723 = vunpack.c.l.b16 %v710
  %v724 = vpack.c.b16 %v721, %v720
  %v725 = vpack.c.b16 %v723, %v722
  %v729 = vsel %vm207, %v711, 0
  %731 = vmatprep.subr.bf16.mxu0 0
  %732 = vmatpush1.bf16.msra.mxu0 %v724
  %733 = vmatprep.subr.bf16.mxu0 0
  %734 = vmatpush1.bf16.msra.mxu0 %v725
  %735 = vmatprep.subr.bf16.mxu0 0
  %736 = vmatpush1.bf16.msra.mxu0 0
  %737 = vmatprep.subr.bf16.mxu0 0
  %738 = vmatpush1.bf16.msra.mxu0 0
  %739 = vmatprep.subr.bf16.mxu0 0
  %740 = vmatpush1.bf16.msra.mxu0 0
  %741 = vmatprep.subr.bf16.mxu0 0
  %742 = vmatpush1.bf16.msra.mxu0 0
  %743 = vmatprep.subr.bf16.mxu0 0
  %744 = vmatpush1.bf16.msra.mxu0 0
  %745 = vmatprep.subr.bf16.mxu0 0
  %746 = vmatpush1.bf16.msra.mxu0 0
  %747 = vmatprep.subr.bf16.mxu0 0
  %748 = vmatpush1.bf16.msra.mxu0 0
  %749 = vmatprep.subr.bf16.mxu0 0
  %750 = vmatpush1.bf16.msra.mxu0 0
  %751 = vmatprep.subr.bf16.mxu0 0
  %752 = vmatpush1.bf16.msra.mxu0 0
  %753 = vmatprep.subr.bf16.mxu0 0
  %754 = vmatpush1.bf16.msra.mxu0 0
  %755 = vmatprep.subr.bf16.mxu0 0
  %756 = vmatpush1.bf16.msra.mxu0 0
  %757 = vmatprep.subr.bf16.mxu0 0
  %758 = vmatpush1.bf16.msra.mxu0 0
  %759 = vmatprep.subr.bf16.mxu0 0
  %760 = vmatpush1.bf16.msra.mxu0 0
  %761 = vmatprep.subr.bf16.mxu0 0
  %762 = vmatpush1.bf16.msra.mxu0 0
  %763 = vmatprep.mubr.bf16.mxu0 0
  %764 = vmatmul.mubr.bf16.gmra.mrb[0].mxu0 %v729
  %v765 = vpop.f32.mrb[0].mxu0
  %v766 = vadd.f32 %v715, %v765
  %v767 = vpop.f32.mrb[0].mxu0
  %v768 = vpop.f32.mrb[0].mxu0
  %v769 = vadd.f32 %v715, %v768
  %v770 = vpop.f32.mrb[0].mxu0
  %771 = vdwg.mxu0
  %v772 = vmul.f32 %v766, %v766
  %v773 = vmul.f32 %v769, %v769
  %v774 = vmul.f32 %v766, %v772
  %v775 = vmul.f32 %v769, %v773
  %v776 = vmul.f32 %v774, 0.044715
  %v777 = vmul.f32 %v775, 0.044715
  %v778 = vadd.f32 %v766, %v776
  %v779 = vadd.f32 %v769, %v777
  %v780 = vmul.f32 %v778, 0.7978846
  %v781 = vmul.f32 %v779, 0.7978846
  %v782 = vtanh.pop %v780
  %v783 = vtanh.pop %v781
  %v784 = vadd.f32 %v782, 1.0
  %v785 = vadd.f32 %v783, 1.0
  %v786 = vmul.f32 %v784, 0.5
  %v787 = vmul.f32 %v785, 0.5
  %v788 = vmul.f32 %v766, %v786
  %v789 = vmul.f32 %v769, %v787
  %v790 = vld [vmem:[%s1 + $0x60] sm:$0xf]
  %v791 = vld [vmem:[%s1 + $0x64] sm:$0xf]
  %v792 = vld [vmem:[%s1 + $0x68] sm:$0xf]
  %v793 = vld [vmem:[%s1 + $0x6c] sm:$0xf]
  %v794 = vld [vmem:[%s1 + $0x70] sm:$0xf]
  %v795 = vld [vmem:[%s1 + $0x74] sm:$0xf]
  %v796 = vld [vmem:[%s1 + $0x78] sm:$0xf]
  %v797 = vld [vmem:[%s1 + $0x7c] sm:$0xf]
  %v798 = vld [vmem:[%s1 + $0x80] sm:$0xf]
  %v799 = vld [vmem:[%s1 + $0x84] sm:$0xf]
  %v800 = vld [vmem:[%s1 + $0x88] sm:$0xf]
  %v801 = vld [vmem:[%s1 + $0x8c] sm:$0xf]
  %v802 = vld [vmem:[%s1 + $0x90] sm:$0xf]
  %v803 = vld [vmem:[%s1 + $0x94] sm:$0xf]
  %v804 = vld [vmem:[%s1 + $0x98] sm:$0xf]
  %v805 = vld [vmem:[%s1 + $0x9c] sm:$0xf]
  %v806 = vpack.c.bf16 %v789, %v788
  %v807 = vlaneseq
  %v808 = vshrl.u32 %v807, 7
  %v809 = vsub.s32 5, %v808
  %v810 = vrot.slane %v19, %v809
  %v827 = vunpack.c.l.b16 %v790
  %v828 = vunpack.c.l.b16 %v791
  %v829 = vunpack.c.l.b16 %v792
  %v830 = vunpack.c.l.b16 %v793
  %v831 = vunpack.c.l.b16 %v794
  %v832 = vunpack.c.l.b16 %v795
  %v833 = vunpack.c.l.b16 %v796
  %v834 = vunpack.c.l.b16 %v797
  %v835 = vunpack.c.l.b16 %v798
  %v836 = vunpack.c.l.b16 %v799
  %v837 = vunpack.c.l.b16 %v800
  %v838 = vunpack.c.l.b16 %v801
  %v839 = vunpack.c.l.b16 %v802
  %v840 = vunpack.c.l.b16 %v803
  %v841 = vunpack.c.l.b16 %v804
  %v842 = vunpack.c.l.b16 %v805
  %v843 = vpack.c.b16 %v828, %v827
  %v844 = vpack.c.b16 %v830, %v829
  %v845 = vpack.c.b16 %v832, %v831
  %v846 = vpack.c.b16 %v834, %v833
  %v847 = vpack.c.b16 %v836, %v835
  %v848 = vpack.c.b16 %v838, %v837
  %v849 = vpack.c.b16 %v840, %v839
  %v850 = vpack.c.b16 %v842, %v841
  %859 = vmatprep.subr.bf16.mxu0 0
  %860 = vmatpush1.bf16.msra.mxu0 %v843
  %861 = vmatprep.subr.bf16.mxu0 0
  %862 = vmatpush1.bf16.msra.mxu0 %v844
  %863 = vmatprep.subr.bf16.mxu0 0
  %864 = vmatpush1.bf16.msra.mxu0 %v845
  %865 = vmatprep.subr.bf16.mxu0 0
  %866 = vmatpush1.bf16.msra.mxu0 %v846
  %867 = vmatprep.subr.bf16.mxu0 0
  %868 = vmatpush1.bf16.msra.mxu0 %v847
  %869 = vmatprep.subr.bf16.mxu0 0
  %870 = vmatpush1.bf16.msra.mxu0 %v848
  %871 = vmatprep.subr.bf16.mxu0 0
  %872 = vmatpush1.bf16.msra.mxu0 %v849
  %873 = vmatprep.subr.bf16.mxu0 0
  %874 = vmatpush1.bf16.msra.mxu0 %v850
  %875 = vmatprep.subr.bf16.mxu0 0
  %876 = vmatpush1.bf16.msra.mxu0 0
  %877 = vmatprep.subr.bf16.mxu0 0
  %878 = vmatpush1.bf16.msra.mxu0 0
  %879 = vmatprep.subr.bf16.mxu0 0
  %880 = vmatpush1.bf16.msra.mxu0 0
  %881 = vmatprep.subr.bf16.mxu0 0
  %882 = vmatpush1.bf16.msra.mxu0 0
  %883 = vmatprep.subr.bf16.mxu0 0
  %884 = vmatpush1.bf16.msra.mxu0 0
  %885 = vmatprep.subr.bf16.mxu0 0
  %886 = vmatpush1.bf16.msra.mxu0 0
  %887 = vmatprep.subr.bf16.mxu0 0
  %888 = vmatpush1.bf16.msra.mxu0 0
  %889 = vmatprep.subr.bf16.mxu0 0
  %890 = vmatpush1.bf16.msra.mxu0 0
  %891 = vmatprep.mubr.bf16.mxu0 0
  %892 = vmatmul.mubr.bf16.gmra.mrb[0].mxu0 %v806
  %v893 = vpop.f32.mrb[0].mxu0
  %v894 = vadd.f32 %v810, %v893
  %v895 = vpop.f32.mrb[0].mxu0
  %v896 = vpop.f32.mrb[0].mxu0
  %v897 = vadd.f32 %v810, %v896
  %v898 = vpop.f32.mrb[0].mxu0
  %899 = vdwg.mxu0
  %v900 = vadd.f32 %v667, %v894
  %v901 = vadd.f32 %v668, %v897
  %v902 = vsel %vm207, %v900, 0.0
  %903 = vadd.xlane.f32.xlu0 %v902
  %v904 = vpop.xlane.xlu0 %903
  %v905 = vsel %vm207, %v901, 0.0
  %906 = vadd.xlane.f32.xlu0 %v905
  %v907 = vpop.xlane.xlu0 %906
  %v908 = vmul.f32 %v904, %v214
  %v909 = vmul.f32 %v907, %v214
  %v910 = vsub.f32 %v900, %v908
  %v911 = vsub.f32 %v901, %v909
  %v912 = vmul.f32 %v910, %v910
  %v913 = vmul.f32 %v911, %v911
  %v914 = vsel %vm207, %v912, 0.0
  %915 = vadd.xlane.f32.xlu0 %v914
  %v916 = vpop.xlane.xlu0 %915
  %v917 = vsel %vm207, %v913, 0.0
  %918 = vadd.xlane.f32.xlu0 %v917
  %v919 = vpop.xlane.xlu0 %918
  %v920 = vmul.f32 %v916, %v214
  %v921 = vmul.f32 %v919, %v214
  %v922 = vadd.f32 %v920, 1e-12
  %v923 = vadd.f32 %v921, 1e-12
  %v924 = vrsqrt.pop %v922
  %v925 = vrsqrt.pop %v923
  %v926 = vmul.f32 %v910, %v924
  %v927 = vmul.f32 %v911, %v925
  %v928 = vlaneseq
  %v929 = vshrl.u32 %v928, 7
  %v930 = vsub.s32 6, %v929
  %v931 = vrot.slane %v19, %v930
  %v932 = vmul.f32 %v926, %v931
  %v933 = vmul.f32 %v927, %v931
  %v934 = vlaneseq
  %v935 = vshrl.u32 %v934, 7
  %v936 = vsub.s32 7, %v935
  %v937 = vrot.slane %v19, %v936
  %v938 = vadd.f32 %v932, %v937
  %v939 = vadd.f32 %v933, %v937
  %v940 = vld [vmem:[%s2 + $0x4] sm:$0xf]
  %v941 = vld [vmem:[%s2 + $0x20] sm:$0xf]
  %v942 = vld [vmem:[%s2 + $0x3c] sm:$0xf]
  %v943 = vld [vmem:[%s2 + $0x58] sm:$0xf]
  %v944 = vpack.c.bf16 %v939, %v938
  %v945 = vlaneseq
  %v946 = vshrl.u32 %v945, 7
  %v947 = vsub.s32 0, %v946
  %v948 = vrot.slane %v20, %v947
  %v953 = vunpack.c.l.b16 %v940
  %v954 = vunpack.c.l.b16 %v941
  %v955 = vunpack.c.l.b16 %v942
  %v956 = vunpack.c.l.b16 %v943
  %v957 = vpack.c.b16 %v954, %v953
  %v958 = vpack.c.b16 %v956, %v955
  %v962 = vsel %vm207, %v944, 0
  %964 = vmatprep.subr.bf16.mxu0 0
  %965 = vmatpush1.bf16.msra.mxu0 %v957
  %966 = vmatprep.subr.bf16.mxu0 0
  %967 = vmatpush1.bf16.msra.mxu0 %v958
  %968 = vmatprep.subr.bf16.mxu0 0
  %969 = vmatpush1.bf16.msra.mxu0 0
  %970 = vmatprep.subr.bf16.mxu0 0
  %971 = vmatpush1.bf16.msra.mxu0 0
  %972 = vmatprep.subr.bf16.mxu0 0
  %973 = vmatpush1.bf16.msra.mxu0 0
  %974 = vmatprep.subr.bf16.mxu0 0
  %975 = vmatpush1.bf16.msra.mxu0 0
  %976 = vmatprep.subr.bf16.mxu0 0
  %977 = vmatpush1.bf16.msra.mxu0 0
  %978 = vmatprep.subr.bf16.mxu0 0
  %979 = vmatpush1.bf16.msra.mxu0 0
  %980 = vmatprep.subr.bf16.mxu0 0
  %981 = vmatpush1.bf16.msra.mxu0 0
  %982 = vmatprep.subr.bf16.mxu0 0
  %983 = vmatpush1.bf16.msra.mxu0 0
  %984 = vmatprep.subr.bf16.mxu0 0
  %985 = vmatpush1.bf16.msra.mxu0 0
  %986 = vmatprep.subr.bf16.mxu0 0
  %987 = vmatpush1.bf16.msra.mxu0 0
  %988 = vmatprep.subr.bf16.mxu0 0
  %989 = vmatpush1.bf16.msra.mxu0 0
  %990 = vmatprep.subr.bf16.mxu0 0
  %991 = vmatpush1.bf16.msra.mxu0 0
  %992 = vmatprep.subr.bf16.mxu0 0
  %993 = vmatpush1.bf16.msra.mxu0 0
  %994 = vmatprep.subr.bf16.mxu0 0
  %995 = vmatpush1.bf16.msra.mxu0 0
  %996 = vmatprep.mubr.bf16.mxu0 0
  %997 = vmatmul.mubr.bf16.gmra.mrb[0].mxu0 %v962
  %v998 = vpop.f32.mrb[0].mxu0
  %v999 = vadd.f32 %v948, %v998
  %v1000 = vpop.f32.mrb[0].mxu0
  %v1001 = vpop.f32.mrb[0].mxu0
  %v1002 = vadd.f32 %v948, %v1001
  %v1003 = vpop.f32.mrb[0].mxu0
  %1004 = vdwg.mxu0
  %v1005 = vld [vmem:[%s2 + $0xc] sm:$0xf]
  %v1006 = vld [vmem:[%s2 + $0x28] sm:$0xf]
  %v1007 = vld [vmem:[%s2 + $0x44] sm:$0xf]
  %v1008 = vld [vmem:[%s2 + $0x60] sm:$0xf]
  %v1009 = vpack.c.bf16 %v1002, %v999
  %1011 = vrot.lane.b32.xlu0 %v1009, 96
  %v1012 = vpop.permute.xlu0 %1011
  %v1014 = vsel %vm320, %v1009, 0
  %v1017 = vsel %vm320, %v1012, 0
  %1019 = vmatprep.subr.bf16.mxu0 0
  %1020 = vmatpush1.bf16.xpose.msra.mxu0 %v1017
  %1021 = vmatprep.subr.bf16.mxu0 0
  %1022 = vmatpush1.bf16.xpose.msra.mxu0 0
  %1023 = vmatprep.subr.bf16.mxu0 0
  %1024 = vmatpush1.bf16.xpose.msra.mxu0 0
  %1025 = vmatprep.subr.bf16.mxu0 0
  %1026 = vmatpush1.bf16.xpose.msra.mxu0 0
  %1027 = vmatprep.subr.bf16.mxu0 0
  %1028 = vmatpush1.bf16.xpose.msra.mxu0 0
  %1029 = vmatprep.subr.bf16.mxu0 0
  %1030 = vmatpush1.bf16.xpose.msra.mxu0 0
  %1031 = vmatprep.subr.bf16.mxu0 0
  %1032 = vmatpush1.bf16.xpose.msra.mxu0 0
  %1033 = vmatprep.subr.bf16.mxu0 0
  %1034 = vmatpush1.bf16.xpose.msra.mxu0 0
  %1035 = vmatprep.subr.bf16.mxu0 0
  %1036 = vmatpush1.bf16.xpose.msra.mxu0 0
  %1037 = vmatprep.subr.bf16.mxu0 0
  %1038 = vmatpush1.bf16.xpose.msra.mxu0 0
  %1039 = vmatprep.subr.bf16.mxu0 0
  %1040 = vmatpush1.bf16.xpose.msra.mxu0 0
  %1041 = vmatprep.subr.bf16.mxu0 0
  %1042 = vmatpush1.bf16.xpose.msra.mxu0 0
  %1043 = vmatprep.subr.bf16.mxu0 0
  %1044 = vmatpush1.bf16.xpose.msra.mxu0 0
  %1045 = vmatprep.subr.bf16.mxu0 0
  %1046 = vmatpush1.bf16.xpose.msra.mxu0 0
  %1047 = vmatprep.subr.bf16.mxu0 0
  %1048 = vmatpush1.bf16.xpose.msra.mxu0 0
  %1049 = vmatprep.subr.bf16.mxu0 0
  %1050 = vmatpush1.bf16.xpose.msra.mxu0 0
  %1051 = vmatprep.mubr.bf16.mxu0 0
  %1052 = vmatmul.mubr.bf16.gmra.mrb[0].mxu0 %v1014
  %v1053 = vpop.f32.mrb[0].mxu0
  %v1054 = vadd.f32 %v205, %v1053
  %v1055 = vpop.f32.mrb[0].mxu0
  %v1056 = vpop.f32.mrb[0].mxu0
  %v1057 = vadd.f32 %v206, %v1056
  %v1058 = vpop.f32.mrb[0].mxu0
  %1059 = vdwg.mxu0
  %v1060 = vsel %vm320, %v1054, -inf
  %1061 = vmax.xlane.f32.xlu0 %v1060
  %v1062 = vpop.xlane.xlu0 %1061
  %v1063 = vsel %vm320, %v1057, -inf
  %1064 = vmax.xlane.f32.xlu0 %v1063
  %v1065 = vpop.xlane.xlu0 %1064
  %v1066 = vsub.f32 %v1054, %v1062
  %v1067 = vsub.f32 %v1057, %v1065
  %v1068 = vmul.f32 %v1066, 1.442695
  %v1069 = vpow.pop %v1068
  %v1070 = vmul.f32 %v1067, 1.442695
  %v1071 = vpow.pop %v1070
  %v1072 = vsel %vm320, %v1069, 0.0
  %1073 = vadd.xlane.f32.xlu0 %v1072
  %v1074 = vpop.xlane.xlu0 %1073
  %v1075 = vsel %vm320, %v1071, 0.0
  %1076 = vadd.xlane.f32.xlu0 %v1075
  %v1077 = vpop.xlane.xlu0 %1076
  %v1078 = vrcp.pop %v1074
  %v1079 = vrcp.pop %v1077
  %v1080 = vmul.f32 %v1069, %v1078
  %v1081 = vmul.f32 %v1071, %v1079
  %v1082 = vpack.c.bf16 %v1081, %v1080
  %1083 = vrot.lane.b32.xlu0 %v1009, 64
  %v1084 = vpop.permute.xlu0 %1083
  %v1087 = vsel %vm320, %v1082, 0
  %1089 = vmatprep.subr.bf16.mxu0 0
  %1090 = vmatpush1.bf16.msra.mxu0 %v1084
  %1091 = vmatprep.subr.bf16.mxu0 0
  %1092 = vmatpush1.bf16.msra.mxu0 0
  %1093 = vmatprep.subr.bf16.mxu0 0
  %1094 = vmatpush1.bf16.msra.mxu0 0
  %1095 = vmatprep.subr.bf16.mxu0 0
  %1096 = vmatpush1.bf16.msra.mxu0 0
  %1097 = vmatprep.subr.bf16.mxu0 0
  %1098 = vmatpush1.bf16.msra.mxu0 0
  %1099 = vmatprep.subr.bf16.mxu0 0
  %1100 = vmatpush1.bf16.msra.mxu0 0
  %1101 = vmatprep.subr.bf16.mxu0 0
  %1102 = vmatpush1.bf16.msra.mxu0 0
  %1103 = vmatprep.subr.bf16.mxu0 0
  %1104 = vmatpush1.bf16.msra.mxu0 0
  %1105 = vmatprep.subr.bf16.mxu0 0
  %1106 = vmatpush1.bf16.msra.mxu0 0
  %1107 = vmatprep.subr.bf16.mxu0 0
  %1108 = vmatpush1.bf16.msra.mxu0 0
  %1109 = vmatprep.subr.bf16.mxu0 0
  %1110 = vmatpush1.bf16.msra.mxu0 0
  %1111 = vmatprep.subr.bf16.mxu0 0
  %1112 = vmatpush1.bf16.msra.mxu0 0
  %1113 = vmatprep.subr.bf16.mxu0 0
  %1114 = vmatpush1.bf16.msra.mxu0 0
  %1115 = vmatprep.subr.bf16.mxu0 0
  %1116 = vmatpush1.bf16.msra.mxu0 0
  %1117 = vmatprep.subr.bf16.mxu0 0
  %1118 = vmatpush1.bf16.msra.mxu0 0
  %1119 = vmatprep.subr.bf16.mxu0 0
  %1120 = vmatpush1.bf16.msra.mxu0 0
  %1121 = vmatprep.mubr.bf16.mxu0 0
  %1122 = vmatmul.mubr.bf16.gmra.mrb[0].mxu0 %v1087
  %v1123 = vpop.f32.mrb[0].mxu0
  %v1124 = vadd.f32 0.0, %v1123
  %v1125 = vpop.f32.mrb[0].mxu0
  %v1126 = vpop.f32.mrb[0].mxu0
  %v1127 = vadd.f32 0.0, %v1126
  %v1128 = vpop.f32.mrb[0].mxu0
  %1129 = vdwg.mxu0
  %v1130 = vpack.c.bf16 %v1127, %v1124
  %1131 = vrot.lane.b32.xlu0 %v1009, 112
  %v1132 = vpop.permute.xlu0 %1131
  %1133 = vrot.lane.b32.xlu0 %v1009, 80
  %v1134 = vpop.permute.xlu0 %1133
  %v1136 = vsel %vm320, %v1132, 0
  %v1139 = vsel %vm320, %v1134, 0
  %1141 = vmatprep.subr.bf16.mxu0 0
  %1142 = vmatpush1.bf16.xpose.msra.mxu0 %v1139
  %1143 = vmatprep.subr.bf16.mxu0 0
  %1144 = vmatpush1.bf16.xpose.msra.mxu0 0
  %1145 = vmatprep.subr.bf16.mxu0 0
  %1146 = vmatpush1.bf16.xpose.msra.mxu0 0
  %1147 = vmatprep.subr.bf16.mxu0 0
  %1148 = vmatpush1.bf16.xpose.msra.mxu0 0
  %1149 = vmatprep.subr.bf16.mxu0 0
  %1150 = vmatpush1.bf16.xpose.msra.mxu0 0
  %1151 = vmatprep.subr.bf16.mxu0 0
  %1152 = vmatpush1.bf16.xpose.msra.mxu0 0
  %1153 = vmatprep.subr.bf16.mxu0 0
  %1154 = vmatpush1.bf16.xpose.msra.mxu0 0
  %1155 = vmatprep.subr.bf16.mxu0 0
  %1156 = vmatpush1.bf16.xpose.msra.mxu0 0
  %1157 = vmatprep.subr.bf16.mxu0 0
  %1158 = vmatpush1.bf16.xpose.msra.mxu0 0
  %1159 = vmatprep.subr.bf16.mxu0 0
  %1160 = vmatpush1.bf16.xpose.msra.mxu0 0
  %1161 = vmatprep.subr.bf16.mxu0 0
  %1162 = vmatpush1.bf16.xpose.msra.mxu0 0
  %1163 = vmatprep.subr.bf16.mxu0 0
  %1164 = vmatpush1.bf16.xpose.msra.mxu0 0
  %1165 = vmatprep.subr.bf16.mxu0 0
  %1166 = vmatpush1.bf16.xpose.msra.mxu0 0
  %1167 = vmatprep.subr.bf16.mxu0 0
  %1168 = vmatpush1.bf16.xpose.msra.mxu0 0
  %1169 = vmatprep.subr.bf16.mxu0 0
  %1170 = vmatpush1.bf16.xpose.msra.mxu0 0
  %1171 = vmatprep.subr.bf16.mxu0 0
  %1172 = vmatpush1.bf16.xpose.msra.mxu0 0
  %1173 = vmatprep.mubr.bf16.mxu0 0
  %1174 = vmatmul.mubr.bf16.gmra.mrb[0].mxu0 %v1136
  %v1175 = vpop.f32.mrb[0].mxu0
  %v1176 = vadd.f32 %v205, %v1175
  %v1177 = vpop.f32.mrb[0].mxu0
  %v1178 = vpop.f32.mrb[0].mxu0
  %v1179 = vadd.f32 %v206, %v1178
  %v1180 = vpop.f32.mrb[0].mxu0
  %1181 = vdwg.mxu0
  %v1182 = vsel %vm320, %v1176, -inf
  %1183 = vmax.xlane.f32.xlu0 %v1182
  %v1184 = vpop.xlane.xlu0 %1183
  %v1185 = vsel %vm320, %v1179, -inf
  %1186 = vmax.xlane.f32.xlu0 %v1185
  %v1187 = vpop.xlane.xlu0 %1186
  %v1188 = vsub.f32 %v1176, %v1184
  %v1189 = vsub.f32 %v1179, %v1187
  %v1190 = vmul.f32 %v1188, 1.442695
  %v1191 = vpow.pop %v1190
  %v1192 = vmul.f32 %v1189, 1.442695
  %v1193 = vpow.pop %v1192
  %v1194 = vsel %vm320, %v1191, 0.0
  %1195 = vadd.xlane.f32.xlu0 %v1194
  %v1196 = vpop.xlane.xlu0 %1195
  %v1197 = vsel %vm320, %v1193, 0.0
  %1198 = vadd.xlane.f32.xlu0 %v1197
  %v1199 = vpop.xlane.xlu0 %1198
  %v1200 = vrcp.pop %v1196
  %v1201 = vrcp.pop %v1199
  %v1202 = vmul.f32 %v1191, %v1200
  %v1203 = vmul.f32 %v1193, %v1201
  %v1204 = vpack.c.bf16 %v1203, %v1202
  %1205 = vrot.lane.b32.xlu0 %v1009, 48
  %v1206 = vpop.permute.xlu0 %1205
  %v1209 = vsel %vm320, %v1204, 0
  %1211 = vmatprep.subr.bf16.mxu0 0
  %1212 = vmatpush1.bf16.msra.mxu0 %v1206
  %1213 = vmatprep.subr.bf16.mxu0 0
  %1214 = vmatpush1.bf16.msra.mxu0 0
  %1215 = vmatprep.subr.bf16.mxu0 0
  %1216 = vmatpush1.bf16.msra.mxu0 0
  %1217 = vmatprep.subr.bf16.mxu0 0
  %1218 = vmatpush1.bf16.msra.mxu0 0
  %1219 = vmatprep.subr.bf16.mxu0 0
  %1220 = vmatpush1.bf16.msra.mxu0 0
  %1221 = vmatprep.subr.bf16.mxu0 0
  %1222 = vmatpush1.bf16.msra.mxu0 0
  %1223 = vmatprep.subr.bf16.mxu0 0
  %1224 = vmatpush1.bf16.msra.mxu0 0
  %1225 = vmatprep.subr.bf16.mxu0 0
  %1226 = vmatpush1.bf16.msra.mxu0 0
  %1227 = vmatprep.subr.bf16.mxu0 0
  %1228 = vmatpush1.bf16.msra.mxu0 0
  %1229 = vmatprep.subr.bf16.mxu0 0
  %1230 = vmatpush1.bf16.msra.mxu0 0
  %1231 = vmatprep.subr.bf16.mxu0 0
  %1232 = vmatpush1.bf16.msra.mxu0 0
  %1233 = vmatprep.subr.bf16.mxu0 0
  %1234 = vmatpush1.bf16.msra.mxu0 0
  %1235 = vmatprep.subr.bf16.mxu0 0
  %1236 = vmatpush1.bf16.msra.mxu0 0
  %1237 = vmatprep.subr.bf16.mxu0 0
  %1238 = vmatpush1.bf16.msra.mxu0 0
  %1239 = vmatprep.subr.bf16.mxu0 0
  %1240 = vmatpush1.bf16.msra.mxu0 0
  %1241 = vmatprep.subr.bf16.mxu0 0
  %1242 = vmatpush1.bf16.msra.mxu0 0
  %1243 = vmatprep.mubr.bf16.mxu0 0
  %1244 = vmatmul.mubr.bf16.gmra.mrb[0].mxu0 %v1209
  %v1245 = vpop.f32.mrb[0].mxu0
  %v1246 = vadd.f32 0.0, %v1245
  %v1247 = vpop.f32.mrb[0].mxu0
  %v1248 = vpop.f32.mrb[0].mxu0
  %v1249 = vadd.f32 0.0, %v1248
  %v1250 = vpop.f32.mrb[0].mxu0
  %1251 = vdwg.mxu0
  %v1252 = vpack.c.bf16 %v1249, %v1246
  %v1255 = vunpack.c.l.b16 %v1007
  %v1256 = vunpack.c.l.b16 %v1008
  %v1257 = vpack.c.b16 %v1256, %v1255
  %v1260 = vsel %vm320, %v1252, 0
  %1262 = vmatprep.subr.bf16.mxu0 0
  %1263 = vmatpush1.bf16.msra.mxu0 %v1257
  %1264 = vmatprep.subr.bf16.mxu0 0
  %1265 = vmatpush1.bf16.msra.mxu0 0
  %1266 = vmatprep.subr.bf16.mxu0 0
  %1267 = vmatpush1.bf16.msra.mxu0 0
  %1268 = vmatprep.subr.bf16.mxu0 0
  %1269 = vmatpush1.bf16.msra.mxu0 0
  %1270 = vmatprep.subr.bf16.mxu0 0
  %1271 = vmatpush1.bf16.msra.mxu0 0
  %1272 = vmatprep.subr.bf16.mxu0 0
  %1273 = vmatpush1.bf16.msra.mxu0 0
  %1274 = vmatprep.subr.bf16.mxu0 0
  %1275 = vmatpush1.bf16.msra.mxu0 0
  %1276 = vmatprep.subr.bf16.mxu0 0
  %1277 = vmatpush1.bf16.msra.mxu0 0
  %1278 = vmatprep.subr.bf16.mxu0 0
  %1279 = vmatpush1.bf16.msra.mxu0 0
  %1280 = vmatprep.subr.bf16.mxu0 0
  %1281 = vmatpush1.bf16.msra.mxu0 0
  %1282 = vmatprep.subr.bf16.mxu0 0
  %1283 = vmatpush1.bf16.msra.mxu0 0
  %1284 = vmatprep.subr.bf16.mxu0 0
  %1285 = vmatpush1.bf16.msra.mxu0 0
  %1286 = vmatprep.subr.bf16.mxu0 0
  %1287 = vmatpush1.bf16.msra.mxu0 0
  %1288 = vmatprep.subr.bf16.mxu0 0
  %1289 = vmatpush1.bf16.msra.mxu0 0
  %1290 = vmatprep.subr.bf16.mxu0 0
  %1291 = vmatpush1.bf16.msra.mxu0 0
  %1292 = vmatprep.subr.bf16.mxu0 0
  %1293 = vmatpush1.bf16.msra.mxu0 0
  %1294 = vmatprep.mubr.bf16.mxu0 0
  %1295 = vmatmul.mubr.bf16.gmra.mrb[0].mxu0 %v1260
  %v1296 = vpop.f32.mrb[0].mxu0
  %v1297 = vadd.f32 0.0, %v1296
  %v1298 = vpop.f32.mrb[0].mxu0
  %v1299 = vpop.f32.mrb[0].mxu0
  %v1300 = vadd.f32 0.0, %v1299
  %v1301 = vpop.f32.mrb[0].mxu0
  %1302 = vdwg.mxu0
  %v1305 = vunpack.c.l.b16 %v1005
  %v1306 = vunpack.c.l.b16 %v1006
  %v1307 = vpack.c.b16 %v1306, %v1305
  %v1310 = vsel %vm320, %v1130, 0
  %1312 = vmatprep.subr.bf16.mxu0 0
  %1313 = vmatpush1.bf16.msra.mxu0 %v1307
  %1314 = vmatprep.subr.bf16.mxu0 0
  %1315 = vmatpush1.bf16.msra.mxu0 0
  %1316 = vmatprep.subr.bf16.mxu0 0
  %1317 = vmatpush1.bf16.msra.mxu0 0
  %1318 = vmatprep.subr.bf16.mxu0 0
  %1319 = vmatpush1.bf16.msra.mxu0 0
  %1320 = vmatprep.subr.bf16.mxu0 0
  %1321 = vmatpush1.bf16.msra.mxu0 0
  %1322 = vmatprep.subr.bf16.mxu0 0
  %1323 = vmatpush1.bf16.msra.mxu0 0
  %1324 = vmatprep.subr.bf16.mxu0 0
  %1325 = vmatpush1.bf16.msra.mxu0 0
  %1326 = vmatprep.subr.bf16.mxu0 0
  %1327 = vmatpush1.bf16.msra.mxu0 0
  %1328 = vmatprep.subr.bf16.mxu0 0
  %1329 = vmatpush1.bf16.msra.mxu0 0
  %1330 = vmatprep.subr.bf16.mxu0 0
  %1331 = vmatpush1.bf16.msra.mxu0 0
  %1332 = vmatprep.subr.bf16.mxu0 0
  %1333 = vmatpush1.bf16.msra.mxu0 0
  %1334 = vmatprep.subr.bf16.mxu0 0
  %1335 = vmatpush1.bf16.msra.mxu0 0
  %1336 = vmatprep.subr.bf16.mxu0 0
  %1337 = vmatpush1.bf16.msra.mxu0 0
  %1338 = vmatprep.subr.bf16.mxu0 0
  %1339 = vmatpush1.bf16.msra.mxu0 0
  %1340 = vmatprep.subr.bf16.mxu0 0
  %1341 = vmatpush1.bf16.msra.mxu0 0
  %1342 = vmatprep.subr.bf16.mxu0 0
  %1343 = vmatpush1.bf16.msra.mxu0 0
  %1344 = vmatprep.mubr.bf16.mxu0 0
  %1345 = vmatmul.mubr.bf16.gmra.mrb[0].mxu0 %v1310
  %v1346 = vpop.f32.mrb[0].mxu0
  %v1347 = vadd.f32 %v1297, %v1346
  %v1348 = vpop.f32.mrb[0].mxu0
  %v1349 = vpop.f32.mrb[0].mxu0
  %v1350 = vadd.f32 %v1300, %v1349
  %v1351 = vpop.f32.mrb[0].mxu0
  %1352 = vdwg.mxu0
  %v1353 = vlaneseq
  %v1354 = vshrl.u32 %v1353, 7
  %v1355 = vsub.s32 1, %v1354
  %v1356 = vrot.slane %v20, %v1355
  %v1357 = vadd.f32 %v1347, %v1356
  %v1358 = vadd.f32 %v1350, %v1356
  %v1359 = vadd.f32 %v900, %v1357
  %v1360 = vadd.f32 %v901, %v1358
  %v1361 = vsel %vm207, %v1359, 0.0
  %1362 = vadd.xlane.f32.xlu0 %v1361
  %v1363 = vpop.xlane.xlu0 %1362
  %v1364 = vsel %vm207, %v1360, 0.0
  %1365 = vadd.xlane.f32.xlu0 %v1364
  %v1366 = vpop.xlane.xlu0 %1365
  %v1367 = vmul.f32 %v1363, %v214
  %v1368 = vmul.f32 %v1366, %v214
  %v1369 = vsub.f32 %v1359, %v1367
  %v1370 = vsub.f32 %v1360, %v1368
  %v1371 = vmul.f32 %v1369, %v1369
  %v1372 = vmul.f32 %v1370, %v1370
  %v1373 = vsel %vm207, %v1371, 0.0
  %1374 = vadd.xlane.f32.xlu0 %v1373
  %v1375 = vpop.xlane.xlu0 %1374
  %v1376 = vsel %vm207, %v1372, 0.0
  %1377 = vadd.xlane.f32.xlu0 %v1376
  %v1378 = vpop.xlane.xlu0 %1377
  %v1379 = vmul.f32 %v1375, %v214
  %v1380 = vmul.f32 %v1378, %v214
  %v1381 = vadd.f32 %v1379, 1e-12
  %v1382 = vadd.f32 %v1380, 1e-12
  %v1383 = vrsqrt.pop %v1381
  %v1384 = vrsqrt.pop %v1382
  %v1385 = vmul.f32 %v1369, %v1383
  %v1386 = vmul.f32 %v1370, %v1384
  %v1387 = vlaneseq
  %v1388 = vshrl.u32 %v1387, 7
  %v1389 = vsub.s32 2, %v1388
  %v1390 = vrot.slane %v20, %v1389
  %v1391 = vmul.f32 %v1385, %v1390
  %v1392 = vmul.f32 %v1386, %v1390
  %v1393 = vlaneseq
  %v1394 = vshrl.u32 %v1393, 7
  %v1395 = vsub.s32 3, %v1394
  %v1396 = vrot.slane %v20, %v1395
  %v1397 = vadd.f32 %v1391, %v1396
  %v1398 = vadd.f32 %v1392, %v1396
  %v1399 = vld [vmem:[%s2 + $0x14] sm:$0xf]
  %v1400 = vld [vmem:[%s2 + $0x30] sm:$0xf]
  %v1401 = vld [vmem:[%s2 + $0x4c] sm:$0xf]
  %v1402 = vld [vmem:[%s2 + $0x68] sm:$0xf]
  %v1403 = vpack.c.bf16 %v1398, %v1397
  %v1404 = vlaneseq
  %v1405 = vshrl.u32 %v1404, 7
  %v1406 = vsub.s32 4, %v1405
  %v1407 = vrot.slane %v20, %v1406
  %v1412 = vunpack.c.l.b16 %v1399
  %v1413 = vunpack.c.l.b16 %v1400
  %v1414 = vunpack.c.l.b16 %v1401
  %v1415 = vunpack.c.l.b16 %v1402
  %v1416 = vpack.c.b16 %v1413, %v1412
  %v1417 = vpack.c.b16 %v1415, %v1414
  %v1421 = vsel %vm207, %v1403, 0
  %1423 = vmatprep.subr.bf16.mxu0 0
  %1424 = vmatpush1.bf16.msra.mxu0 %v1416
  %1425 = vmatprep.subr.bf16.mxu0 0
  %1426 = vmatpush1.bf16.msra.mxu0 %v1417
  %1427 = vmatprep.subr.bf16.mxu0 0
  %1428 = vmatpush1.bf16.msra.mxu0 0
  %1429 = vmatprep.subr.bf16.mxu0 0
  %1430 = vmatpush1.bf16.msra.mxu0 0
  %1431 = vmatprep.subr.bf16.mxu0 0
  %1432 = vmatpush1.bf16.msra.mxu0 0
  %1433 = vmatprep.subr.bf16.mxu0 0
  %1434 = vmatpush1.bf16.msra.mxu0 0
  %1435 = vmatprep.subr.bf16.mxu0 0
  %1436 = vmatpush1.bf16.msra.mxu0 0
  %1437 = vmatprep.subr.bf16.mxu0 0
  %1438 = vmatpush1.bf16.msra.mxu0 0
  %1439 = vmatprep.subr.bf16.mxu0 0
  %1440 = vmatpush1.bf16.msra.mxu0 0
  %1441 = vmatprep.subr.bf16.mxu0 0
  %1442 = vmatpush1.bf16.msra.mxu0 0
  %1443 = vmatprep.subr.bf16.mxu0 0
  %1444 = vmatpush1.bf16.msra.mxu0 0
  %1445 = vmatprep.subr.bf16.mxu0 0
  %1446 = vmatpush1.bf16.msra.mxu0 0
  %1447 = vmatprep.subr.bf16.mxu0 0
  %1448 = vmatpush1.bf16.msra.mxu0 0
  %1449 = vmatprep.subr.bf16.mxu0 0
  %1450 = vmatpush1.bf16.msra.mxu0 0
  %1451 = vmatprep.subr.bf16.mxu0 0
  %1452 = vmatpush1.bf16.msra.mxu0 0
  %1453 = vmatprep.subr.bf16.mxu0 0
  %1454 = vmatpush1.bf16.msra.mxu0 0
  %1455 = vmatprep.mubr.bf16.mxu0 0
  %1456 = vmatmul.mubr.bf16.gmra.mrb[0].mxu0 %v1421
  %v1457 = vpop.f32.mrb[0].mxu0
  %v1458 = vadd.f32 %v1407, %v1457
  %v1459 = vpop.f32.mrb[0].mxu0
  %v1460 = vpop.f32.mrb[0].mxu0
  %v1461 = vadd.f32 %v1407, %v1460
  %v1462 = vpop.f32.mrb[0].mxu0
  %1463 = vdwg.mxu0
  %v1464 = vmul.f32 %v1458, %v1458
  %v1465 = vmul.f32 %v1461, %v1461
  %v1466 = vmul.f32 %v1458, %v1464
  %v1467 = vmul.f32 %v1461, %v1465
  %v1468 = vmul.f32 %v1466, 0.044715
  %v1469 = vmul.f32 %v1467, 0.044715
  %v1470 = vadd.f32 %v1458, %v1468
  %v1471 = vadd.f32 %v1461, %v1469
  %v1472 = vmul.f32 %v1470, 0.7978846
  %v1473 = vmul.f32 %v1471, 0.7978846
  %v1474 = vtanh.pop %v1472
  %v1475 = vtanh.pop %v1473
  %v1476 = vadd.f32 %v1474, 1.0
  %v1477 = vadd.f32 %v1475, 1.0
  %v1478 = vmul.f32 %v1476, 0.5
  %v1479 = vmul.f32 %v1477, 0.5
  %v1480 = vmul.f32 %v1458, %v1478
  %v1481 = vmul.f32 %v1461, %v1479
  %v1482 = vld [vmem:[%s1 + $0xa0] sm:$0xf]
  %v1483 = vld [vmem:[%s1 + $0xa4] sm:$0xf]
  %v1484 = vld [vmem:[%s1 + $0xa8] sm:$0xf]
  %v1485 = vld [vmem:[%s1 + $0xac] sm:$0xf]
  %v1486 = vld [vmem:[%s1 + $0xb0] sm:$0xf]
  %v1487 = vld [vmem:[%s1 + $0xb4] sm:$0xf]
  %v1488 = vld [vmem:[%s1 + $0xb8] sm:$0xf]
  %v1489 = vld [vmem:[%s1 + $0xbc] sm:$0xf]
  %v1490 = vld [vmem:[%s1 + $0xc0] sm:$0xf]
  %v1491 = vld [vmem:[%s1 + $0xc4] sm:$0xf]
  %v1492 = vld [vmem:[%s1 + $0xc8] sm:$0xf]
  %v1493 = vld [vmem:[%s1 + $0xcc] sm:$0xf]
  %v1494 = vld [vmem:[%s1 + $0xd0] sm:$0xf]
  %v1495 = vld [vmem:[%s1 + $0xd4] sm:$0xf]
  %v1496 = vld [vmem:[%s1 + $0xd8] sm:$0xf]
  %v1497 = vld [vmem:[%s1 + $0xdc] sm:$0xf]
  %v1498 = vpack.c.bf16 %v1481, %v1480
  %v1499 = vlaneseq
  %v1500 = vshrl.u32 %v1499, 7
  %v1501 = vsub.s32 5, %v1500
  %v1502 = vrot.slane %v20, %v1501
  %v1519 = vunpack.c.l.b16 %v1482
  %v1520 = vunpack.c.l.b16 %v1483
  %v1521 = vunpack.c.l.b16 %v1484
  %v1522 = vunpack.c.l.b16 %v1485
  %v1523 = vunpack.c.l.b16 %v1486
  %v1524 = vunpack.c.l.b16 %v1487
  %v1525 = vunpack.c.l.b16 %v1488
  %v1526 = vunpack.c.l.b16 %v1489
  %v1527 = vunpack.c.l.b16 %v1490
  %v1528 = vunpack.c.l.b16 %v1491
  %v1529 = vunpack.c.l.b16 %v1492
  %v1530 = vunpack.c.l.b16 %v1493
  %v1531 = vunpack.c.l.b16 %v1494
  %v1532 = vunpack.c.l.b16 %v1495
  %v1533 = vunpack.c.l.b16 %v1496
  %v1534 = vunpack.c.l.b16 %v1497
  %v1535 = vpack.c.b16 %v1520, %v1519
  %v1536 = vpack.c.b16 %v1522, %v1521
  %v1537 = vpack.c.b16 %v1524, %v1523
  %v1538 = vpack.c.b16 %v1526, %v1525
  %v1539 = vpack.c.b16 %v1528, %v1527
  %v1540 = vpack.c.b16 %v1530, %v1529
  %v1541 = vpack.c.b16 %v1532, %v1531
  %v1542 = vpack.c.b16 %v1534, %v1533
  %1551 = vmatprep.subr.bf16.mxu0 0
  %1552 = vmatpush1.bf16.msra.mxu0 %v1535
  %1553 = vmatprep.subr.bf16.mxu0 0
  %1554 = vmatpush1.bf16.msra.mxu0 %v1536
  %1555 = vmatprep.subr.bf16.mxu0 0
  %1556 = vmatpush1.bf16.msra.mxu0 %v1537
  %1557 = vmatprep.subr.bf16.mxu0 0
  %1558 = vmatpush1.bf16.msra.mxu0 %v1538
  %1559 = vmatprep.subr.bf16.mxu0 0
  %1560 = vmatpush1.bf16.msra.mxu0 %v1539
  %1561 = vmatprep.subr.bf16.mxu0 0
  %1562 = vmatpush1.bf16.msra.mxu0 %v1540
  %1563 = vmatprep.subr.bf16.mxu0 0
  %1564 = vmatpush1.bf16.msra.mxu0 %v1541
  %1565 = vmatprep.subr.bf16.mxu0 0
  %1566 = vmatpush1.bf16.msra.mxu0 %v1542
  %1567 = vmatprep.subr.bf16.mxu0 0
  %1568 = vmatpush1.bf16.msra.mxu0 0
  %1569 = vmatprep.subr.bf16.mxu0 0
  %1570 = vmatpush1.bf16.msra.mxu0 0
  %1571 = vmatprep.subr.bf16.mxu0 0
  %1572 = vmatpush1.bf16.msra.mxu0 0
  %1573 = vmatprep.subr.bf16.mxu0 0
  %1574 = vmatpush1.bf16.msra.mxu0 0
  %1575 = vmatprep.subr.bf16.mxu0 0
  %1576 = vmatpush1.bf16.msra.mxu0 0
  %1577 = vmatprep.subr.bf16.mxu0 0
  %1578 = vmatpush1.bf16.msra.mxu0 0
  %1579 = vmatprep.subr.bf16.mxu0 0
  %1580 = vmatpush1.bf16.msra.mxu0 0
  %1581 = vmatprep.subr.bf16.mxu0 0
  %1582 = vmatpush1.bf16.msra.mxu0 0
  %1583 = vmatprep.mubr.bf16.mxu0 0
  %1584 = vmatmul.mubr.bf16.gmra.mrb[0].mxu0 %v1498
  %v1585 = vpop.f32.mrb[0].mxu0
  %v1586 = vadd.f32 %v1502, %v1585
  %v1587 = vpop.f32.mrb[0].mxu0
  %v1588 = vpop.f32.mrb[0].mxu0
  %v1589 = vadd.f32 %v1502, %v1588
  %v1590 = vpop.f32.mrb[0].mxu0
  %1591 = vdwg.mxu0
  %v1592 = vadd.f32 %v1359, %v1586
  %v1593 = vadd.f32 %v1360, %v1589
  %v1595 = vrot.slane %v1593, 7
  %v1597 = vsel %vm185, %v1592, %v1595
  %vm1598 = vcmask 254976
  %v1599 = vsel %vm1598, %v1597, 0.0
  %1600 = vadd.xlane.f32.xlu0 %v1599
  %v1601 = vpop.xlane.xlu0 %1600
  %v1602 = vmul.f32 %v1601, %v214
  %v1603 = vsub.f32 %v1597, %v1602
  %v1604 = vmul.f32 %v1603, %v1603
  %v1605 = vsel %vm1598, %v1604, 0.0
  %1606 = vadd.xlane.f32.xlu0 %v1605
  %v1607 = vpop.xlane.xlu0 %1606
  %v1608 = vmul.f32 %v1607, %v214
  %v1609 = vadd.f32 %v1608, 1e-12
  %v1610 = vrsqrt.pop %v1609
  %v1611 = vmul.f32 %v1603, %v1610
  %v1612 = vlaneseq
  %v1613 = vshrl.u32 %v1612, 7
  %v1614 = vsub.s32 6, %v1613
  %v1615 = vrot.slane %v20, %v1614
  %v1616 = vmul.f32 %v1611, %v1615
  %v1617 = vlaneseq
  %v1618 = vshrl.u32 %v1617, 7
  %v1619 = vsub.s32 7, %v1618
  %v1620 = vrot.slane %v20, %v1619
  %v1621 = vadd.f32 %v1616, %v1620
  %v1622 = vld [vmem:[%s2 + $0x18] sm:$0xf]
  %v1623 = vld [vmem:[%s2 + $0x34] sm:$0xf]
  %v1624 = vld [vmem:[%s2 + $0x50] sm:$0xf]
  %v1625 = vld [vmem:[%s2 + $0x6c] sm:$0xf]
  %v1626 = vpack.c.bf16 %v1621, %v1621
  %v1627 = vlaneseq
  %v1628 = vshrl.u32 %v1627, 7
  %v1629 = vsub.s32 0, %v1628
  %v1630 = vrot.slane %v21, %v1629
  %v1635 = vunpack.c.l.b16 %v1622
  %v1636 = vunpack.c.l.b16 %v1623
  %v1637 = vunpack.c.l.b16 %v1624
  %v1638 = vunpack.c.l.b16 %v1625
  %v1639 = vpack.c.b16 %v1636, %v1635
  %v1640 = vpack.c.b16 %v1638, %v1637
  %v1644 = vsel %vm207, %v1626, 0
  %1646 = vmatprep.subr.bf16.mxu0 0
  %1647 = vmatpush1.bf16.msra.mxu0 %v1639
  %1648 = vmatprep.subr.bf16.mxu0 0
  %1649 = vmatpush1.bf16.msra.mxu0 %v1640
  %1650 = vmatprep.subr.bf16.mxu0 0
  %1651 = vmatpush1.bf16.msra.mxu0 0
  %1652 = vmatprep.subr.bf16.mxu0 0
  %1653 = vmatpush1.bf16.msra.mxu0 0
  %1654 = vmatprep.subr.bf16.mxu0 0
  %1655 = vmatpush1.bf16.msra.mxu0 0
  %1656 = vmatprep.subr.bf16.mxu0 0
  %1657 = vmatpush1.bf16.msra.mxu0 0
  %1658 = vmatprep.subr.bf16.mxu0 0
  %1659 = vmatpush1.bf16.msra.mxu0 0
  %1660 = vmatprep.subr.bf16.mxu0 0
  %1661 = vmatpush1.bf16.msra.mxu0 0
  %1662 = vmatprep.subr.bf16.mxu0 0
  %1663 = vmatpush1.bf16.msra.mxu0 0
  %1664 = vmatprep.subr.bf16.mxu0 0
  %1665 = vmatpush1.bf16.msra.mxu0 0
  %1666 = vmatprep.subr.bf16.mxu0 0
  %1667 = vmatpush1.bf16.msra.mxu0 0
  %1668 = vmatprep.subr.bf16.mxu0 0
  %1669 = vmatpush1.bf16.msra.mxu0 0
  %1670 = vmatprep.subr.bf16.mxu0 0
  %1671 = vmatpush1.bf16.msra.mxu0 0
  %1672 = vmatprep.subr.bf16.mxu0 0
  %1673 = vmatpush1.bf16.msra.mxu0 0
  %1674 = vmatprep.subr.bf16.mxu0 0
  %1675 = vmatpush1.bf16.msra.mxu0 0
  %1676 = vmatprep.subr.bf16.mxu0 0
  %1677 = vmatpush1.bf16.msra.mxu0 0
  %1678 = vmatprep.mubr.bf16.mxu0 0
  %1679 = vmatmul.mubr.bf16.gmra.mrb[0].mxu0 %v1644
  %v1680 = vpop.f32.mrb[0].mxu0
  %v1681 = vadd.f32 %v1630, %v1680
  %v1682 = vpop.f32.mrb[0].mxu0
  %v1683 = vpop.f32.mrb[0].mxu0
  %v1684 = vpop.f32.mrb[0].mxu0
  %1685 = vdwg.mxu0
  %1686 = vst [vmem:[%s4] sm:$0x3] %v1681
  // Predicated region
  $region18: #{dual_head_vit_forward.1} parent=0 // pred_check
    _
  $region19: #{dual_head_vit_forward.1} parent=0 // pred_check_branch
    %1688 = sbr.rel (0) target = $region21
  $region20: #{dual_head_vit_forward.1} parent=0 // pred_region
    _
  $region21: #{dual_head_vit_forward.1} parent=0 // pred_fallthru
    _
  // Predicated region
  $region22: #{dual_head_vit_forward.1} parent=0 // pred_check
    _
  $region23: #{dual_head_vit_forward.1} parent=0 // pred_check_branch
    %1690 = sbr.rel (0) target = $region25
  $region24: #{dual_head_vit_forward.1} parent=0 // pred_region
    _
  $region25: #{dual_head_vit_forward.1} parent=0 // pred_fallthru
    _

</llo_original>
